<compile_context>
chip_gen: v5e
topology: v5e:2x2
jax: 0.10.0
libtpu: 0.0.40
codegen_flags: <defaults>
</compile_context>

<pallas_src>
import functools

import jax
import jax.numpy as jnp
import numpy as np
from jax.experimental import pallas as pl
from jax.experimental.pallas import tpu as pltpu


def _silu(x):
    return x * jax.nn.sigmoid(x)


# ---------------------------------------------------------------------------
# Pallas kernel: whole batch in one invocation, (C, H*W) lane-dense layout.
# ---------------------------------------------------------------------------
def _mbconv_kernel(x_ref, wexp_ref, wdw_ref, mask_ref, wse_ref, bse1_ref,
                   wpw_ref, cbias_ref, out_ref, *, W):
    N, _, HW = x_ref.shape
    Cexp = wexp_ref.shape[0]
    Cout = wpw_ref.shape[0]
    Cse = bse1_ref.shape[1]

    # Packed per-channel bias columns; each is (C, 1) and broadcasts over the
    # lane (H*W) axis.
    b_exp = cbias_ref[:, 0:1]                 # expansion conv bias   (Cexp, 1)
    dw_b = cbias_ref[:, 1:2]                  # folded dwise-BN bias  (Cexp, 1)
    b_se2 = cbias_ref[:, 2:3]                 # SE expand bias        (Cexp, 1)
    pw_b = cbias_ref[0:Cout, 3:4]             # folded pwise-BN bias  (Cout, 1)

    w_se1t = wse_ref[:, 0:Cse]                # SE reduce weight^T    (Cexp, Cse)
    w_se2 = wse_ref[:, Cse:2 * Cse]           # SE expand weight      (Cexp, Cse)

    wexp = wexp_ref[...]                      # (Cexp, Cin)
    wdw = wdw_ref[...]                        # (Cexp, 9)   BN scale pre-folded
    wpw = wpw_ref[...]                        # (Cout, Cexp) BN scale pre-folded
    masks = mask_ref[...]                     # (9, HW) 0/1 boundary masks

    for n in range(N):                        # N is tiny and static: unrolled
        x_n = x_ref[n]                        # (Cin, HW)

        # ---- 1x1 expansion conv + bias + SiLU (MXU, N = HW lane-dense) ----
        xe = jnp.dot(wexp, x_n, preferred_element_type=jnp.float32) + b_exp
        xe = _silu(xe)                        # (Cexp, HW)

        # ---- depthwise 3x3, stride 1, pad 1 (+ folded BN bias + SiLU) -----
        # Tap (dy, dx): roll xe along the lane axis by dy*W+dx (XLU), zero the
        # wrapped positions with a precomputed mask, scale per channel (VPU).
        acc = jnp.zeros((Cexp, HW), jnp.float32)
        for dy in (-1, 0, 1):
            for dx in (-1, 0, 1):
                tap = (dy + 1) * 3 + (dx + 1)
                shift = (-(dy * W + dx)) % HW
                shifted = pltpu.roll(xe, shift, 1) if shift else xe
                if dy != 0 or dx != 0:
                    shifted = shifted * masks[tap:tap + 1, :]
                acc = acc + shifted * wdw[:, tap:tap + 1]
        acc = _silu(acc + dw_b)               # (Cexp, HW)

        # ---- squeeze-and-excitation (kept off the MXU: tiny dims) ---------
        s = jnp.mean(acc, axis=1, keepdims=True)                   # (Cexp, 1)
        s1 = jnp.sum(w_se1t * s, axis=0, keepdims=True) + bse1_ref[...]
        s1 = _silu(s1)                                             # (1, Cse)
        gate = jax.nn.sigmoid(
            jnp.sum(w_se2 * s1, axis=1, keepdims=True) + b_se2)    # (Cexp, 1)
        acc = acc * gate

        # ---- 1x1 projection + folded-BN bias (linear bottleneck) ----------
        yp = jnp.dot(wpw, acc, preferred_element_type=jnp.float32) + pw_b

        # ---- stochastic depth (eval: identity) + residual add -------------
        out_ref[n] = (yp + x_n).astype(out_ref.dtype)   # (Cout, HW) lane-dense


# ---------------------------------------------------------------------------
# Wrapper: no grid (single invocation), whole arrays resident in VMEM.
# ---------------------------------------------------------------------------
def mbconv_pallas(x_flat, kp, *, W):
    N, _, HW = x_flat.shape
    Cout = kp["w_pw"].shape[0]
    kernel = functools.partial(_mbconv_kernel, W=W)
    return pl.pallas_call(
        kernel,
        out_shape=jax.ShapeDtypeStruct((N, Cout, HW), x_flat.dtype),
        in_specs=[pl.BlockSpec(memory_space=pltpu.MemorySpace.VMEM)
                  for _ in range(8)],
        out_specs=pl.BlockSpec(memory_space=pltpu.MemorySpace.VMEM),
    )(x_flat, kp["w_exp"], kp["w_dw"], kp["dw_mask"], kp["w_se"],
      kp["b_se1"], kp["w_pw"], kp["cbias"])


@jax.jit
def mbconv_forward(x_nchw, kp):
    """NCHW in -> NCHW out. Only free reshapes at the boundary, no transposes."""
    N, C, H, W = x_nchw.shape
    y = mbconv_pallas(x_nchw.reshape(N, C, H * W), kp, W=W)
    return y.reshape(N, y.shape[1], H, W)


# ---------------------------------------------------------------------------
# Parameter packing: fold BN scales into weights, pack biases + boundary masks.
# ---------------------------------------------------------------------------
def _dw_boundary_masks(H, W):
    hh, ww = np.meshgrid(np.arange(H), np.arange(W), indexing="ij")
    hh = hh.reshape(-1)
    ww = ww.reshape(-1)
    m = np.zeros((9, H * W), np.float32)
    for dy in (-1, 0, 1):
        for dx in (-1, 0, 1):
            tap = (dy + 1) * 3 + (dx + 1)
            m[tap] = ((hh + dy >= 0) & (hh + dy < H) &
                      (ww + dx >= 0) & (ww + dx < W)).astype(np.float32)
    return jnp.asarray(m)


def pack_params(p, H, W):
    Cexp, _ = p["w_exp"].shape
    Cout = p["w_pw"].shape[0]
    Cse = p["w_se1"].shape[0]

    cbias = np.zeros((Cexp, 4), np.float32)
    cbias[:, 0] = np.asarray(p["b_exp"])
    cbias[:, 1] = np.asarray(p["dw_bias"])
    cbias[:, 2] = np.asarray(p["b_se2"])
    cbias[:Cout, 3] = np.asarray(p["pw_bias"])

    return {
        "w_exp": p["w_exp"],                                          # (Cexp, Cin)
        "w_dw": p["w_dw"].reshape(Cexp, 9) * p["dw_scale"][:, None],  # BN folded
        "dw_mask": _dw_boundary_masks(H, W),                          # (9, H*W)
        "w_se": jnp.concatenate([p["w_se1"].T, p["w_se2"]], axis=1),  # (Cexp, 2*Cse)
        "b_se1": p["b_se1"].reshape(1, Cse),
        "w_pw": p["w_pw"] * p["pw_scale"][:, None],                   # BN folded
        "cbias": jnp.asarray(cbias),                                  # packed biases
    }


# ---------------------------------------------------------------------------
# Pure-JAX NCHW reference (independent math path) used to validate the kernel.
# ---------------------------------------------------------------------------
def mbconv_ref(x, p):
    N, Cin, H, W = x.shape
    hp = jax.lax.Precision.HIGHEST
    xe = jnp.einsum("oc,nchw->nohw", p["w_exp"], x, precision=hp) \
        + p["b_exp"][None, :, None, None]
    xe = _silu(xe)
    xp = jnp.pad(xe, ((0, 0), (0, 0), (1, 1), (1, 1)))
    acc = jnp.zeros_like(xe)
    for ky in range(3):
        for kx in range(3):
            acc = acc + xp[:, :, ky:ky + H, kx:kx + W] \
                * p["w_dw"][None, :, ky, kx, None, None]
    acc = _silu(acc * p["dw_scale"][None, :, None, None]
                + p["dw_bias"][None, :, None, None])
    s = acc.mean(axis=(2, 3))                                     # (N, Cexp)
    s1 = _silu(jnp.dot(s, p["w_se1"].T, precision=hp) + p["b_se1"])
    gate = jax.nn.sigmoid(jnp.dot(s1, p["w_se2"].T, precision=hp) + p["b_se2"])
    acc = acc * gate[:, :, None, None]
    yp = jnp.einsum("oc,nchw->nohw", p["w_pw"], acc, precision=hp) \
        * p["pw_scale"][None, :, None, None] + p["pw_bias"][None, :, None, None]
    return yp + x


# ---------------------------------------------------------------------------
# Deterministic synthetic parameters (conv weights + folded inference BN).
# ---------------------------------------------------------------------------
def make_params(key, cin, cout, expansion, s_ratio=4, eps=1e-5):
    cexp = expansion * cin
    cse = cexp // s_ratio
    ks = jax.random.split(key, 17)
    nrm = lambda k, shp, s=0.1: s * jax.random.normal(k, shp, jnp.float32)

    def fold_bn(kg, kb, km, kv, c):
        gamma = 1.0 + nrm(kg, (c,))
        beta = nrm(kb, (c,))
        mean = nrm(km, (c,))
        var = 1.0 + jnp.abs(nrm(kv, (c,)))
        scale = gamma / jnp.sqrt(var + eps)
        return scale, beta - mean * scale

    dw_scale, dw_bias = fold_bn(ks[4], ks[5], ks[6], ks[7], cexp)
    pw_scale, pw_bias = fold_bn(ks[13], ks[14], ks[15], ks[16], cout)
    return {
        "w_exp": nrm(ks[0], (cexp, cin)),      # 1x1 expansion conv (out, in)
        "b_exp": nrm(ks[1], (cexp,)),
        "w_dw": nrm(ks[2], (cexp, 3, 3)),      # depthwise 3x3 (ch, ky, kx)
        "dw_scale": dw_scale, "dw_bias": dw_bias,
        "w_se1": nrm(ks[8], (cse, cexp)),      # SE reduce (out, in)
        "b_se1": nrm(ks[9], (cse,)),
        "w_se2": nrm(ks[10], (cexp, cse)),     # SE expand (out, in)
        "b_se2": nrm(ks[11], (cexp,)),
        "w_pw": nrm(ks[12], (cout, cexp)),     # 1x1 projection (out, in)
        "pw_scale": pw_scale, "pw_bias": pw_bias,
    }


if __name__ == "__main__":
    key = jax.random.PRNGKey(0)
    k_x, k_p = jax.random.split(key)

    N, Cin, H, W = 2, 4, 16, 16          # small, consistent with the module
    expansion, Cout = 4, 4               # residual config: Cin == Cout, stride 1

    x_nchw = jax.random.normal(k_x, (N, Cin, H, W), jnp.float32)
    raw_params = make_params(k_p, Cin, Cout, expansion)
    kparams = pack_params(raw_params, H, W)   # BN folded, biases/masks packed

    y = mbconv_forward(x_nchw, kparams)
    y = jax.block_until_ready(y)

    # validate the Pallas lowering against an independent pure-JAX reference
    y_ref = mbconv_ref(x_nchw, raw_params)
    np.testing.assert_allclose(np.asarray(y), np.asarray(y_ref),
                               rtol=5e-4, atol=5e-4)

    print("KERNEL_OK")
</pallas_src>

<mosaic_0001>
module attributes {stable_mosaic.version = 11 : i64} {
  func.func @_mbconv_kernel(%arg0: memref<2x4x256xf32, #tpu.memory_space<vmem>>, %arg1: memref<16x4xf32, #tpu.memory_space<vmem>>, %arg2: memref<16x9xf32, #tpu.memory_space<vmem>>, %arg3: memref<9x256xf32, #tpu.memory_space<vmem>>, %arg4: memref<16x8xf32, #tpu.memory_space<vmem>>, %arg5: memref<1x4xf32, #tpu.memory_space<vmem>>, %arg6: memref<4x16xf32, #tpu.memory_space<vmem>>, %arg7: memref<16x4xf32, #tpu.memory_space<vmem>>, %arg8: memref<2x4x256xf32, #tpu.memory_space<vmem>>) attributes {dimension_semantics = [], scalar_prefetch = 0 : i64, scratch_operands = 0 : i64, tpu.core_type = #tpu.core_type<tc>} {
    %c0 = arith.constant 0 : index
    %c0_0 = arith.constant 0 : index
    %0 = vector.load %arg7[%c0, %c0_0] : memref<16x4xf32, #tpu.memory_space<vmem>>, vector<16x1xf32>
    %c0_1 = arith.constant 0 : index
    %c1 = arith.constant 1 : index
    %1 = vector.load %arg7[%c0_1, %c1] : memref<16x4xf32, #tpu.memory_space<vmem>>, vector<16x1xf32>
    %c0_2 = arith.constant 0 : index
    %c2 = arith.constant 2 : index
    %2 = vector.load %arg7[%c0_2, %c2] : memref<16x4xf32, #tpu.memory_space<vmem>>, vector<16x1xf32>
    %c0_3 = arith.constant 0 : index
    %c3 = arith.constant 3 : index
    %3 = vector.load %arg7[%c0_3, %c3] : memref<16x4xf32, #tpu.memory_space<vmem>>, vector<4x1xf32>
    %c0_4 = arith.constant 0 : index
    %c0_5 = arith.constant 0 : index
    %4 = vector.load %arg4[%c0_4, %c0_5] : memref<16x8xf32, #tpu.memory_space<vmem>>, vector<16x4xf32>
    %c0_6 = arith.constant 0 : index
    %c4 = arith.constant 4 : index
    %5 = vector.load %arg4[%c0_6, %c4] : memref<16x8xf32, #tpu.memory_space<vmem>>, vector<16x4xf32>
    %c0_7 = arith.constant 0 : index
    %c0_8 = arith.constant 0 : index
    %6 = vector.load %arg1[%c0_7, %c0_8] : memref<16x4xf32, #tpu.memory_space<vmem>>, vector<16x4xf32>
    %c0_9 = arith.constant 0 : index
    %c0_10 = arith.constant 0 : index
    %7 = vector.load %arg2[%c0_9, %c0_10] : memref<16x9xf32, #tpu.memory_space<vmem>>, vector<16x9xf32>
    %c0_11 = arith.constant 0 : index
    %c0_12 = arith.constant 0 : index
    %8 = vector.load %arg6[%c0_11, %c0_12] : memref<4x16xf32, #tpu.memory_space<vmem>>, vector<4x16xf32>
    %c0_13 = arith.constant 0 : index
    %c0_14 = arith.constant 0 : index
    %9 = vector.load %arg3[%c0_13, %c0_14] : memref<9x256xf32, #tpu.memory_space<vmem>>, vector<9x256xf32>
    %c0_15 = arith.constant 0 : index
    %c0_16 = arith.constant 0 : index
    %c0_17 = arith.constant 0 : index
    %10 = vector.load %arg0[%c0_15, %c0_16, %c0_17] : memref<2x4x256xf32, #tpu.memory_space<vmem>>, vector<1x4x256xf32>
    %11 = vector.shape_cast %10 : vector<1x4x256xf32> to vector<4x256xf32>
    %cst = arith.constant dense<0.000000e+00> : vector<16x256xf32>
    %12 = tpu.matmul %6, %11, %cst {dimension_numbers = #tpu.dot_dimension_numbers<[1], [0], [0], [1], [0, 0, 1, 1], [], []>} : vector<16x4xf32>, vector<4x256xf32>, vector<16x256xf32> -> vector<16x256xf32>
    %13 = vector.broadcast %0 : vector<16x1xf32> to vector<16x256xf32>
    %14 = arith.addf %12, %13 : vector<16x256xf32>
    %15 = arith.negf %14 : vector<16x256xf32>
    %16 = math.exp %15 : vector<16x256xf32>
    %cst_18 = arith.constant 1.000000e+00 : f32
    %17 = vector.broadcast %cst_18 : f32 to vector<16x256xf32>
    %18 = arith.addf %17, %16 : vector<16x256xf32>
    %19 = arith.divf %17, %18 : vector<16x256xf32>
    %20 = arith.mulf %14, %19 : vector<16x256xf32>
    %cst_19 = arith.constant 0.000000e+00 : f32
    %21 = vector.broadcast %cst_19 : f32 to vector<16x256xf32>
    %c17_i32 = arith.constant 17 : i32
    %22 = tpu.dynamic_rotate %20 by %c17_i32 dim 1 : vector<16x256xf32>, i32 -> vector<16x256xf32>
    %23 = vector.extract_strided_slice %9 {offsets = [0, 0], sizes = [1, 256], strides = [1, 1]} : vector<9x256xf32> to vector<1x256xf32>
    %24 = vector.broadcast %23 : vector<1x256xf32> to vector<16x256xf32>
    %25 = arith.mulf %22, %24 : vector<16x256xf32>
    %26 = vector.extract_strided_slice %7 {offsets = [0, 0], sizes = [16, 1], strides = [1, 1]} : vector<16x9xf32> to vector<16x1xf32>
    %27 = vector.broadcast %26 : vector<16x1xf32> to vector<16x256xf32>
    %28 = arith.mulf %25, %27 : vector<16x256xf32>
    %29 = arith.addf %21, %28 : vector<16x256xf32>
    %c16_i32 = arith.constant 16 : i32
    %30 = tpu.dynamic_rotate %20 by %c16_i32 dim 1 : vector<16x256xf32>, i32 -> vector<16x256xf32>
    %31 = vector.extract_strided_slice %9 {offsets = [1, 0], sizes = [1, 256], strides = [1, 1]} : vector<9x256xf32> to vector<1x256xf32>
    %32 = vector.broadcast %31 : vector<1x256xf32> to vector<16x256xf32>
    %33 = arith.mulf %30, %32 : vector<16x256xf32>
    %34 = vector.extract_strided_slice %7 {offsets = [0, 1], sizes = [16, 1], strides = [1, 1]} : vector<16x9xf32> to vector<16x1xf32>
    %35 = vector.broadcast %34 : vector<16x1xf32> to vector<16x256xf32>
    %36 = arith.mulf %33, %35 : vector<16x256xf32>
    %37 = arith.addf %29, %36 : vector<16x256xf32>
    %c15_i32 = arith.constant 15 : i32
    %38 = tpu.dynamic_rotate %20 by %c15_i32 dim 1 : vector<16x256xf32>, i32 -> vector<16x256xf32>
    %39 = vector.extract_strided_slice %9 {offsets = [2, 0], sizes = [1, 256], strides = [1, 1]} : vector<9x256xf32> to vector<1x256xf32>
    %40 = vector.broadcast %39 : vector<1x256xf32> to vector<16x256xf32>
    %41 = arith.mulf %38, %40 : vector<16x256xf32>
    %42 = vector.extract_strided_slice %7 {offsets = [0, 2], sizes = [16, 1], strides = [1, 1]} : vector<16x9xf32> to vector<16x1xf32>
    %43 = vector.broadcast %42 : vector<16x1xf32> to vector<16x256xf32>
    %44 = arith.mulf %41, %43 : vector<16x256xf32>
    %45 = arith.addf %37, %44 : vector<16x256xf32>
    %c1_i32 = arith.constant 1 : i32
    %46 = tpu.dynamic_rotate %20 by %c1_i32 dim 1 : vector<16x256xf32>, i32 -> vector<16x256xf32>
    %47 = vector.extract_strided_slice %9 {offsets = [3, 0], sizes = [1, 256], strides = [1, 1]} : vector<9x256xf32> to vector<1x256xf32>
    %48 = vector.broadcast %47 : vector<1x256xf32> to vector<16x256xf32>
    %49 = arith.mulf %46, %48 : vector<16x256xf32>
    %50 = vector.extract_strided_slice %7 {offsets = [0, 3], sizes = [16, 1], strides = [1, 1]} : vector<16x9xf32> to vector<16x1xf32>
    %51 = vector.broadcast %50 : vector<16x1xf32> to vector<16x256xf32>
    %52 = arith.mulf %49, %51 : vector<16x256xf32>
    %53 = arith.addf %45, %52 : vector<16x256xf32>
    %54 = vector.extract_strided_slice %7 {offsets = [0, 4], sizes = [16, 1], strides = [1, 1]} : vector<16x9xf32> to vector<16x1xf32>
    %55 = vector.broadcast %54 : vector<16x1xf32> to vector<16x256xf32>
    %56 = arith.mulf %20, %55 : vector<16x256xf32>
    %57 = arith.addf %53, %56 : vector<16x256xf32>
    %c255_i32 = arith.constant 255 : i32
    %58 = tpu.dynamic_rotate %20 by %c255_i32 dim 1 : vector<16x256xf32>, i32 -> vector<16x256xf32>
    %59 = vector.extract_strided_slice %9 {offsets = [5, 0], sizes = [1, 256], strides = [1, 1]} : vector<9x256xf32> to vector<1x256xf32>
    %60 = vector.broadcast %59 : vector<1x256xf32> to vector<16x256xf32>
    %61 = arith.mulf %58, %60 : vector<16x256xf32>
    %62 = vector.extract_strided_slice %7 {offsets = [0, 5], sizes = [16, 1], strides = [1, 1]} : vector<16x9xf32> to vector<16x1xf32>
    %63 = vector.broadcast %62 : vector<16x1xf32> to vector<16x256xf32>
    %64 = arith.mulf %61, %63 : vector<16x256xf32>
    %65 = arith.addf %57, %64 : vector<16x256xf32>
    %c241_i32 = arith.constant 241 : i32
    %66 = tpu.dynamic_rotate %20 by %c241_i32 dim 1 : vector<16x256xf32>, i32 -> vector<16x256xf32>
    %67 = vector.extract_strided_slice %9 {offsets = [6, 0], sizes = [1, 256], strides = [1, 1]} : vector<9x256xf32> to vector<1x256xf32>
    %68 = vector.broadcast %67 : vector<1x256xf32> to vector<16x256xf32>
    %69 = arith.mulf %66, %68 : vector<16x256xf32>
    %70 = vector.extract_strided_slice %7 {offsets = [0, 6], sizes = [16, 1], strides = [1, 1]} : vector<16x9xf32> to vector<16x1xf32>
    %71 = vector.broadcast %70 : vector<16x1xf32> to vector<16x256xf32>
    %72 = arith.mulf %69, %71 : vector<16x256xf32>
    %73 = arith.addf %65, %72 : vector<16x256xf32>
    %c240_i32 = arith.constant 240 : i32
    %74 = tpu.dynamic_rotate %20 by %c240_i32 dim 1 : vector<16x256xf32>, i32 -> vector<16x256xf32>
    %75 = vector.extract_strided_slice %9 {offsets = [7, 0], sizes = [1, 256], strides = [1, 1]} : vector<9x256xf32> to vector<1x256xf32>
    %76 = vector.broadcast %75 : vector<1x256xf32> to vector<16x256xf32>
    %77 = arith.mulf %74, %76 : vector<16x256xf32>
    %78 = vector.extract_strided_slice %7 {offsets = [0, 7], sizes = [16, 1], strides = [1, 1]} : vector<16x9xf32> to vector<16x1xf32>
    %79 = vector.broadcast %78 : vector<16x1xf32> to vector<16x256xf32>
    %80 = arith.mulf %77, %79 : vector<16x256xf32>
    %81 = arith.addf %73, %80 : vector<16x256xf32>
    %c239_i32 = arith.constant 239 : i32
    %82 = tpu.dynamic_rotate %20 by %c239_i32 dim 1 : vector<16x256xf32>, i32 -> vector<16x256xf32>
    %83 = vector.extract_strided_slice %9 {offsets = [8, 0], sizes = [1, 256], strides = [1, 1]} : vector<9x256xf32> to vector<1x256xf32>
    %84 = vector.broadcast %83 : vector<1x256xf32> to vector<16x256xf32>
    %85 = arith.mulf %82, %84 : vector<16x256xf32>
    %86 = vector.extract_strided_slice %7 {offsets = [0, 8], sizes = [16, 1], strides = [1, 1]} : vector<16x9xf32> to vector<16x1xf32>
    %87 = vector.broadcast %86 : vector<16x1xf32> to vector<16x256xf32>
    %88 = arith.mulf %85, %87 : vector<16x256xf32>
    %89 = arith.addf %81, %88 : vector<16x256xf32>
    %90 = vector.broadcast %1 : vector<16x1xf32> to vector<16x256xf32>
    %91 = arith.addf %89, %90 : vector<16x256xf32>
    %92 = arith.negf %91 : vector<16x256xf32>
    %93 = math.exp %92 : vector<16x256xf32>
    %cst_20 = arith.constant 1.000000e+00 : f32
    %94 = vector.broadcast %cst_20 : f32 to vector<16x256xf32>
    %95 = arith.addf %94, %93 : vector<16x256xf32>
    %96 = arith.divf %94, %95 : vector<16x256xf32>
    %97 = arith.mulf %91, %96 : vector<16x256xf32>
    %cst_21 = arith.constant dense<0.000000e+00> : vector<16xf32>
    %98 = vector.multi_reduction <add>, %97, %cst_21 [1] : vector<16x256xf32> to vector<16xf32>
    %99 = vector.shape_cast %98 : vector<16xf32> to vector<16x1xf32>
    %cst_22 = arith.constant 2.560000e+02 : f32
    %100 = vector.broadcast %cst_22 : f32 to vector<16x1xf32>
    %101 = arith.divf %99, %100 : vector<16x1xf32>
    %102 = vector.broadcast %101 : vector<16x1xf32> to vector<16x4xf32>
    %103 = arith.mulf %4, %102 : vector<16x4xf32>
    %cst_23 = arith.constant dense<0.000000e+00> : vector<4xf32>
    %104 = vector.multi_reduction <add>, %103, %cst_23 [0] : vector<16x4xf32> to vector<4xf32>
    %105 = vector.shape_cast %104 : vector<4xf32> to vector<1x4xf32>
    %c0_24 = arith.constant 0 : index
    %c0_25 = arith.constant 0 : index
    %106 = vector.load %arg5[%c0_24, %c0_25] : memref<1x4xf32, #tpu.memory_space<vmem>>, vector<1x4xf32>
    %107 = arith.addf %105, %106 : vector<1x4xf32>
    %108 = arith.negf %107 : vector<1x4xf32>
    %109 = math.exp %108 : vector<1x4xf32>
    %cst_26 = arith.constant 1.000000e+00 : f32
    %110 = vector.broadcast %cst_26 : f32 to vector<1x4xf32>
    %111 = arith.addf %110, %109 : vector<1x4xf32>
    %112 = arith.divf %110, %111 : vector<1x4xf32>
    %113 = arith.mulf %107, %112 : vector<1x4xf32>
    %114 = vector.broadcast %113 : vector<1x4xf32> to vector<16x4xf32>
    %115 = arith.mulf %5, %114 : vector<16x4xf32>
    %cst_27 = arith.constant dense<0.000000e+00> : vector<16xf32>
    %116 = vector.multi_reduction <add>, %115, %cst_27 [1] : vector<16x4xf32> to vector<16xf32>
    %117 = vector.shape_cast %116 : vector<16xf32> to vector<16x1xf32>
    %118 = arith.addf %117, %2 : vector<16x1xf32>
    %119 = arith.negf %118 : vector<16x1xf32>
    %120 = math.exp %119 : vector<16x1xf32>
    %cst_28 = arith.constant 1.000000e+00 : f32
    %121 = vector.broadcast %cst_28 : f32 to vector<16x1xf32>
    %122 = arith.addf %121, %120 : vector<16x1xf32>
    %123 = arith.divf %121, %122 : vector<16x1xf32>
    %124 = vector.broadcast %123 : vector<16x1xf32> to vector<16x256xf32>
    %125 = arith.mulf %97, %124 : vector<16x256xf32>
    %cst_29 = arith.constant dense<0.000000e+00> : vector<4x256xf32>
    %126 = tpu.matmul %8, %125, %cst_29 {dimension_numbers = #tpu.dot_dimension_numbers<[1], [0], [0], [1], [0, 0, 1, 1], [], []>} : vector<4x16xf32>, vector<16x256xf32>, vector<4x256xf32> -> vector<4x256xf32>
    %127 = vector.broadcast %3 : vector<4x1xf32> to vector<4x256xf32>
    %128 = arith.addf %126, %127 : vector<4x256xf32>
    %129 = arith.addf %128, %11 : vector<4x256xf32>
    %c0_30 = arith.constant 0 : index
    %c0_31 = arith.constant 0 : index
    %c0_32 = arith.constant 0 : index
    %130 = vector.load %arg8[%c0_30, %c0_31, %c0_32] : memref<2x4x256xf32, #tpu.memory_space<vmem>>, vector<1x4x256xf32>
    %131 = vector.shape_cast %130 : vector<1x4x256xf32> to vector<4x256xf32>
    %132 = vector.shape_cast %129 : vector<4x256xf32> to vector<1x4x256xf32>
    tpu.vector_store %arg8[%c0_30, %c0_31, %c0_32], %132 {strides = array<i32>} : memref<2x4x256xf32, #tpu.memory_space<vmem>>, vector<1x4x256xf32>,
    %c1_33 = arith.constant 1 : index
    %c0_34 = arith.constant 0 : index
    %c0_35 = arith.constant 0 : index
    %133 = vector.load %arg0[%c1_33, %c0_34, %c0_35] : memref<2x4x256xf32, #tpu.memory_space<vmem>>, vector<1x4x256xf32>
    %134 = vector.shape_cast %133 : vector<1x4x256xf32> to vector<4x256xf32>
    %cst_36 = arith.constant dense<0.000000e+00> : vector<16x256xf32>
    %135 = tpu.matmul %6, %134, %cst_36 {dimension_numbers = #tpu.dot_dimension_numbers<[1], [0], [0], [1], [0, 0, 1, 1], [], []>} : vector<16x4xf32>, vector<4x256xf32>, vector<16x256xf32> -> vector<16x256xf32>
    %136 = vector.broadcast %0 : vector<16x1xf32> to vector<16x256xf32>
    %137 = arith.addf %135, %136 : vector<16x256xf32>
    %138 = arith.negf %137 : vector<16x256xf32>
    %139 = math.exp %138 : vector<16x256xf32>
    %cst_37 = arith.constant 1.000000e+00 : f32
    %140 = vector.broadcast %cst_37 : f32 to vector<16x256xf32>
    %141 = arith.addf %140, %139 : vector<16x256xf32>
    %142 = arith.divf %140, %141 : vector<16x256xf32>
    %143 = arith.mulf %137, %142 : vector<16x256xf32>
    %cst_38 = arith.constant 0.000000e+00 : f32
    %144 = vector.broadcast %cst_38 : f32 to vector<16x256xf32>
    %c17_i32_39 = arith.constant 17 : i32
    %145 = tpu.dynamic_rotate %143 by %c17_i32_39 dim 1 : vector<16x256xf32>, i32 -> vector<16x256xf32>
    %146 = vector.extract_strided_slice %9 {offsets = [0, 0], sizes = [1, 256], strides = [1, 1]} : vector<9x256xf32> to vector<1x256xf32>
    %147 = vector.broadcast %146 : vector<1x256xf32> to vector<16x256xf32>
    %148 = arith.mulf %145, %147 : vector<16x256xf32>
    %149 = vector.extract_strided_slice %7 {offsets = [0, 0], sizes = [16, 1], strides = [1, 1]} : vector<16x9xf32> to vector<16x1xf32>
    %150 = vector.broadcast %149 : vector<16x1xf32> to vector<16x256xf32>
    %151 = arith.mulf %148, %150 : vector<16x256xf32>
    %152 = arith.addf %144, %151 : vector<16x256xf32>
    %c16_i32_40 = arith.constant 16 : i32
    %153 = tpu.dynamic_rotate %143 by %c16_i32_40 dim 1 : vector<16x256xf32>, i32 -> vector<16x256xf32>
    %154 = vector.extract_strided_slice %9 {offsets = [1, 0], sizes = [1, 256], strides = [1, 1]} : vector<9x256xf32> to vector<1x256xf32>
    %155 = vector.broadcast %154 : vector<1x256xf32> to vector<16x256xf32>
    %156 = arith.mulf %153, %155 : vector<16x256xf32>
    %157 = vector.extract_strided_slice %7 {offsets = [0, 1], sizes = [16, 1], strides = [1, 1]} : vector<16x9xf32> to vector<16x1xf32>
    %158 = vector.broadcast %157 : vector<16x1xf32> to vector<16x256xf32>
    %159 = arith.mulf %156, %158 : vector<16x256xf32>
    %160 = arith.addf %152, %159 : vector<16x256xf32>
    %c15_i32_41 = arith.constant 15 : i32
    %161 = tpu.dynamic_rotate %143 by %c15_i32_41 dim 1 : vector<16x256xf32>, i32 -> vector<16x256xf32>
    %162 = vector.extract_strided_slice %9 {offsets = [2, 0], sizes = [1, 256], strides = [1, 1]} : vector<9x256xf32> to vector<1x256xf32>
    %163 = vector.broadcast %162 : vector<1x256xf32> to vector<16x256xf32>
    %164 = arith.mulf %161, %163 : vector<16x256xf32>
    %165 = vector.extract_strided_slice %7 {offsets = [0, 2], sizes = [16, 1], strides = [1, 1]} : vector<16x9xf32> to vector<16x1xf32>
    %166 = vector.broadcast %165 : vector<16x1xf32> to vector<16x256xf32>
    %167 = arith.mulf %164, %166 : vector<16x256xf32>
    %168 = arith.addf %160, %167 : vector<16x256xf32>
    %c1_i32_42 = arith.constant 1 : i32
    %169 = tpu.dynamic_rotate %143 by %c1_i32_42 dim 1 : vector<16x256xf32>, i32 -> vector<16x256xf32>
    %170 = vector.extract_strided_slice %9 {offsets = [3, 0], sizes = [1, 256], strides = [1, 1]} : vector<9x256xf32> to vector<1x256xf32>
    %171 = vector.broadcast %170 : vector<1x256xf32> to vector<16x256xf32>
    %172 = arith.mulf %169, %171 : vector<16x256xf32>
    %173 = vector.extract_strided_slice %7 {offsets = [0, 3], sizes = [16, 1], strides = [1, 1]} : vector<16x9xf32> to vector<16x1xf32>
    %174 = vector.broadcast %173 : vector<16x1xf32> to vector<16x256xf32>
    %175 = arith.mulf %172, %174 : vector<16x256xf32>
    %176 = arith.addf %168, %175 : vector<16x256xf32>
    %177 = vector.extract_strided_slice %7 {offsets = [0, 4], sizes = [16, 1], strides = [1, 1]} : vector<16x9xf32> to vector<16x1xf32>
    %178 = vector.broadcast %177 : vector<16x1xf32> to vector<16x256xf32>
    %179 = arith.mulf %143, %178 : vector<16x256xf32>
    %180 = arith.addf %176, %179 : vector<16x256xf32>
    %c255_i32_43 = arith.constant 255 : i32
    %181 = tpu.dynamic_rotate %143 by %c255_i32_43 dim 1 : vector<16x256xf32>, i32 -> vector<16x256xf32>
    %182 = vector.extract_strided_slice %9 {offsets = [5, 0], sizes = [1, 256], strides = [1, 1]} : vector<9x256xf32> to vector<1x256xf32>
    %183 = vector.broadcast %182 : vector<1x256xf32> to vector<16x256xf32>
    %184 = arith.mulf %181, %183 : vector<16x256xf32>
    %185 = vector.extract_strided_slice %7 {offsets = [0, 5], sizes = [16, 1], strides = [1, 1]} : vector<16x9xf32> to vector<16x1xf32>
    %186 = vector.broadcast %185 : vector<16x1xf32> to vector<16x256xf32>
    %187 = arith.mulf %184, %186 : vector<16x256xf32>
    %188 = arith.addf %180, %187 : vector<16x256xf32>
    %c241_i32_44 = arith.constant 241 : i32
    %189 = tpu.dynamic_rotate %143 by %c241_i32_44 dim 1 : vector<16x256xf32>, i32 -> vector<16x256xf32>
    %190 = vector.extract_strided_slice %9 {offsets = [6, 0], sizes = [1, 256], strides = [1, 1]} : vector<9x256xf32> to vector<1x256xf32>
    %191 = vector.broadcast %190 : vector<1x256xf32> to vector<16x256xf32>
    %192 = arith.mulf %189, %191 : vector<16x256xf32>
    %193 = vector.extract_strided_slice %7 {offsets = [0, 6], sizes = [16, 1], strides = [1, 1]} : vector<16x9xf32> to vector<16x1xf32>
    %194 = vector.broadcast %193 : vector<16x1xf32> to vector<16x256xf32>
    %195 = arith.mulf %192, %194 : vector<16x256xf32>
    %196 = arith.addf %188, %195 : vector<16x256xf32>
    %c240_i32_45 = arith.constant 240 : i32
    %197 = tpu.dynamic_rotate %143 by %c240_i32_45 dim 1 : vector<16x256xf32>, i32 -> vector<16x256xf32>
    %198 = vector.extract_strided_slice %9 {offsets = [7, 0], sizes = [1, 256], strides = [1, 1]} : vector<9x256xf32> to vector<1x256xf32>
    %199 = vector.broadcast %198 : vector<1x256xf32> to vector<16x256xf32>
    %200 = arith.mulf %197, %199 : vector<16x256xf32>
    %201 = vector.extract_strided_slice %7 {offsets = [0, 7], sizes = [16, 1], strides = [1, 1]} : vector<16x9xf32> to vector<16x1xf32>
    %202 = vector.broadcast %201 : vector<16x1xf32> to vector<16x256xf32>
    %203 = arith.mulf %200, %202 : vector<16x256xf32>
    %204 = arith.addf %196, %203 : vector<16x256xf32>
    %c239_i32_46 = arith.constant 239 : i32
    %205 = tpu.dynamic_rotate %143 by %c239_i32_46 dim 1 : vector<16x256xf32>, i32 -> vector<16x256xf32>
    %206 = vector.extract_strided_slice %9 {offsets = [8, 0], sizes = [1, 256], strides = [1, 1]} : vector<9x256xf32> to vector<1x256xf32>
    %207 = vector.broadcast %206 : vector<1x256xf32> to vector<16x256xf32>
    %208 = arith.mulf %205, %207 : vector<16x256xf32>
    %209 = vector.extract_strided_slice %7 {offsets = [0, 8], sizes = [16, 1], strides = [1, 1]} : vector<16x9xf32> to vector<16x1xf32>
    %210 = vector.broadcast %209 : vector<16x1xf32> to vector<16x256xf32>
    %211 = arith.mulf %208, %210 : vector<16x256xf32>
    %212 = arith.addf %204, %211 : vector<16x256xf32>
    %213 = vector.broadcast %1 : vector<16x1xf32> to vector<16x256xf32>
    %214 = arith.addf %212, %213 : vector<16x256xf32>
    %215 = arith.negf %214 : vector<16x256xf32>
    %216 = math.exp %215 : vector<16x256xf32>
    %cst_47 = arith.constant 1.000000e+00 : f32
    %217 = vector.broadcast %cst_47 : f32 to vector<16x256xf32>
    %218 = arith.addf %217, %216 : vector<16x256xf32>
    %219 = arith.divf %217, %218 : vector<16x256xf32>
    %220 = arith.mulf %214, %219 : vector<16x256xf32>
    %cst_48 = arith.constant dense<0.000000e+00> : vector<16xf32>
    %221 = vector.multi_reduction <add>, %220, %cst_48 [1] : vector<16x256xf32> to vector<16xf32>
    %222 = vector.shape_cast %221 : vector<16xf32> to vector<16x1xf32>
    %cst_49 = arith.constant 2.560000e+02 : f32
    %223 = vector.broadcast %cst_49 : f32 to vector<16x1xf32>
    %224 = arith.divf %222, %223 : vector<16x1xf32>
    %225 = vector.broadcast %224 : vector<16x1xf32> to vector<16x4xf32>
    %226 = arith.mulf %4, %225 : vector<16x4xf32>
    %cst_50 = arith.constant dense<0.000000e+00> : vector<4xf32>
    %227 = vector.multi_reduction <add>, %226, %cst_50 [0] : vector<16x4xf32> to vector<4xf32>
    %228 = vector.shape_cast %227 : vector<4xf32> to vector<1x4xf32>
    %c0_51 = arith.constant 0 : index
    %c0_52 = arith.constant 0 : index
    %229 = vector.load %arg5[%c0_51, %c0_52] : memref<1x4xf32, #tpu.memory_space<vmem>>, vector<1x4xf32>
    %230 = arith.addf %228, %229 : vector<1x4xf32>
    %231 = arith.negf %230 : vector<1x4xf32>
    %232 = math.exp %231 : vector<1x4xf32>
    %cst_53 = arith.constant 1.000000e+00 : f32
    %233 = vector.broadcast %cst_53 : f32 to vector<1x4xf32>
    %234 = arith.addf %233, %232 : vector<1x4xf32>
    %235 = arith.divf %233, %234 : vector<1x4xf32>
    %236 = arith.mulf %230, %235 : vector<1x4xf32>
    %237 = vector.broadcast %236 : vector<1x4xf32> to vector<16x4xf32>
    %238 = arith.mulf %5, %237 : vector<16x4xf32>
    %cst_54 = arith.constant dense<0.000000e+00> : vector<16xf32>
    %239 = vector.multi_reduction <add>, %238, %cst_54 [1] : vector<16x4xf32> to vector<16xf32>
    %240 = vector.shape_cast %239 : vector<16xf32> to vector<16x1xf32>
    %241 = arith.addf %240, %2 : vector<16x1xf32>
    %242 = arith.negf %241 : vector<16x1xf32>
    %243 = math.exp %242 : vector<16x1xf32>
    %cst_55 = arith.constant 1.000000e+00 : f32
    %244 = vector.broadcast %cst_55 : f32 to vector<16x1xf32>
    %245 = arith.addf %244, %243 : vector<16x1xf32>
    %246 = arith.divf %244, %245 : vector<16x1xf32>
    %247 = vector.broadcast %246 : vector<16x1xf32> to vector<16x256xf32>
    %248 = arith.mulf %220, %247 : vector<16x256xf32>
    %cst_56 = arith.constant dense<0.000000e+00> : vector<4x256xf32>
    %249 = tpu.matmul %8, %248, %cst_56 {dimension_numbers = #tpu.dot_dimension_numbers<[1], [0], [0], [1], [0, 0, 1, 1], [], []>} : vector<4x16xf32>, vector<16x256xf32>, vector<4x256xf32> -> vector<4x256xf32>
    %250 = vector.broadcast %3 : vector<4x1xf32> to vector<4x256xf32>
    %251 = arith.addf %249, %250 : vector<4x256xf32>
    %252 = arith.addf %251, %134 : vector<4x256xf32>
    %c1_57 = arith.constant 1 : index
    %c0_58 = arith.constant 0 : index
    %c0_59 = arith.constant 0 : index
    %253 = vector.load %arg8[%c1_57, %c0_58, %c0_59] : memref<2x4x256xf32, #tpu.memory_space<vmem>>, vector<1x4x256xf32>
    %254 = vector.shape_cast %253 : vector<1x4x256xf32> to vector<4x256xf32>
    %255 = vector.shape_cast %252 : vector<4x256xf32> to vector<1x4x256xf32>
    tpu.vector_store %arg8[%c1_57, %c0_58, %c0_59], %255 {strides = array<i32>} : memref<2x4x256xf32, #tpu.memory_space<vmem>>, vector<1x4x256xf32>,
    return
  }
}

</mosaic_0001>

<llo_original>
// kernel: mbconv_forward.1
$region0: #{mbconv_forward.1}
  #allocation0 [shape = 'u32[]', space=smem, size = 0x4, offset = 0x4, fixed_abs, tag = 'smem constant byte address 0x4 - core index']
  #allocation1 [shape = 'u32[72,128]{1,0:T(1,128)}', space=vmem, size = 0x9000, scoped, tag = 'internal scratch']
  %s0 = inlined_call_operand.vmem [shape: f32[2,4,256], index: 0, kind: input, shape index: {}]
  %s1 = inlined_call_operand.vmem [shape: f32[16,4], index: 1, kind: input, shape index: {}]
  %s2 = inlined_call_operand.vmem [shape: f32[16,9], index: 2, kind: input, shape index: {}]
  %s3 = inlined_call_operand.vmem [shape: f32[9,256], index: 3, kind: input, shape index: {}]
  %s4 = inlined_call_operand.vmem [shape: f32[16,8], index: 4, kind: input, shape index: {}]
  %s5 = inlined_call_operand.vmem [shape: f32[1,4], index: 5, kind: input, shape index: {}]
  %s6 = inlined_call_operand.vmem [shape: f32[4,16], index: 6, kind: input, shape index: {}]
  %s7 = inlined_call_operand.vmem [shape: f32[16,4], index: 7, kind: input, shape index: {}]
  %s8 = inlined_call_operand.vmem [shape: f32[2,4,256], index: 8, kind: output, shape index: {}]
  %s9 = sld [smem:[#allocation0]]
  $region42: #{mbconv_forward.1} parent=0
    _
  %s11 = ssub.s32 1, %s9
  %s12 = scalar_select 0, %s11, %s9
  // Predicated region
  $region2: #{mbconv_forward.1} parent=0 // pred_check
    _
  $region3: #{mbconv_forward.1} parent=0 // pred_check_branch
    %14 = sbr.rel (0) target = $region5
  $region4: #{mbconv_forward.1} parent=0 // pred_region
    _
  $region5: #{mbconv_forward.1} parent=0 // pred_fallthru
    _
  // Predicated region
  $region6: #{mbconv_forward.1} parent=0 // pred_check
    _
  $region7: #{mbconv_forward.1} parent=0 // pred_check_branch
    %16 = sbr.rel (0) target = $region9
  $region8: #{mbconv_forward.1} parent=0 // pred_region
    _
  $region9: #{mbconv_forward.1} parent=0 // pred_fallthru
    _
  // Predicated region
  $region10: #{mbconv_forward.1} parent=0 // pred_check
    _
  $region11: #{mbconv_forward.1} parent=0 // pred_check_branch
    %18 = sbr.rel (0) target = $region13
  $region12: #{mbconv_forward.1} parent=0 // pred_region
    _
  $region13: #{mbconv_forward.1} parent=0 // pred_fallthru
    _
  // Predicated region
  $region14: #{mbconv_forward.1} parent=0 // pred_check
    _
  $region15: #{mbconv_forward.1} parent=0 // pred_check_branch
    %20 = sbr.rel (0) target = $region17
  $region16: #{mbconv_forward.1} parent=0 // pred_region
    _
  $region17: #{mbconv_forward.1} parent=0 // pred_fallthru
    _
  // Predicated region
  $region18: #{mbconv_forward.1} parent=0 // pred_check
    _
  $region19: #{mbconv_forward.1} parent=0 // pred_check_branch
    %22 = sbr.rel (0) target = $region21
  $region20: #{mbconv_forward.1} parent=0 // pred_region
    _
  $region21: #{mbconv_forward.1} parent=0 // pred_fallthru
    _
  // Predicated region
  $region22: #{mbconv_forward.1} parent=0 // pred_check
    _
  $region23: #{mbconv_forward.1} parent=0 // pred_check_branch
    %24 = sbr.rel (0) target = $region25
  $region24: #{mbconv_forward.1} parent=0 // pred_region
    _
  $region25: #{mbconv_forward.1} parent=0 // pred_fallthru
    _
  // Predicated region
  $region26: #{mbconv_forward.1} parent=0 // pred_check
    _
  $region27: #{mbconv_forward.1} parent=0 // pred_check_branch
    %26 = sbr.rel (0) target = $region29
  $region28: #{mbconv_forward.1} parent=0 // pred_region
    _
  $region29: #{mbconv_forward.1} parent=0 // pred_fallthru
    _
  // Predicated region
  $region30: #{mbconv_forward.1} parent=0 // pred_check
    _
  $region31: #{mbconv_forward.1} parent=0 // pred_check_branch
    %28 = sbr.rel (0) target = $region33
  $region32: #{mbconv_forward.1} parent=0 // pred_region
    _
  $region33: #{mbconv_forward.1} parent=0 // pred_fallthru
    _
  %v29 = vld [vmem:[%s7] sm:$0xff]
  %v30 = vld [vmem:[%s7 + $0x8] sm:$0xff]
  %v31 = vld [vmem:[%s7] sm:$0xf]
  %v32 = vld [vmem:[%s4] sm:$0xff]
  %v33 = vld [vmem:[%s4 + $0x8] sm:$0xff]
  %v34 = vld [vmem:[%s1] sm:$0xff]
  %v35 = vld [vmem:[%s1 + $0x8] sm:$0xff]
  %v36 = vld [vmem:[%s2] sm:$0xff]
  %v37 = vld [vmem:[%s2 + $0x8] sm:$0xff]
  %v38 = vld [vmem:[%s6] sm:$0xf]
  %v39 = vld [vmem:[%s3] sm:$0xff]
  %v40 = vld [vmem:[%s3 + $0x8] sm:$0xff]
  %v41 = vld [vmem:[%s3 + $0x10] sm:$0x1]
  %v42 = vld [vmem:[%s3 + $0x18] sm:$0x1]
  %v43 = vld [vmem:[%s0] sm:$0xff]
  %45 = vset.pattern.permute.xlu0 0
  %46 = vperm.xlu0 %45, %v29
  %v47 = vpop.permute.xlu0 %46
  %50 = vset.pattern.permute.xlu0 0
  %51 = vperm.xlu0 %50, %v30
  %v52 = vpop.permute.xlu0 %51
  %55 = vst [vmem:[#allocation1] ss:$2 sm:$0xff] %v43
  %v56 = vld.sshfl [vmem:[#allocation1] sm:$0xff pattern:$0x75316420]
  %v57 = vld.sshfl [vmem:[#allocation1 + $0x8] sm:$0xff pattern:$0x75316420]
  %vm58 = vcmask 31744
  %v60 = vsel %vm58, %v34, 0
  %v63 = vsel %vm58, %v35, 0
  %vm65 = vcmask 1043456
  %v66 = vsel %vm65, %v56, 0
  %v68 = vsel %vm65, %v57, 0
  %70 = vmatpush.msra.mxu0 0.0
  %71 = vmatpush.msra.mxu0 0.0
  %72 = vmatpush.msra.mxu0 0.0
  %73 = vmatpush.msra.mxu0 0.0
  %74 = vmatpush.msra.mxu0 0.0
  %75 = vmatpush.msra.mxu0 0.0
  %76 = vmatpush.msra.mxu0 0.0
  %77 = vmatpush.msra.mxu0 0.0
  %78 = vmatpush.msra.mxu0 0.0
  %79 = vmatpush.msra.mxu0 0.0
  %80 = vmatpush.msra.mxu0 0.0
  %81 = vmatpush.msra.mxu0 0.0
  %82 = vmatpush.msra.mxu0 0.0
  %83 = vmatpush.msra.mxu0 0.0
  %84 = vmatpush.msra.mxu0 0.0
  %85 = vmatpush.msra.mxu0 %v66
  %86 = vmatmul.f32.gmra.mxu0 %v60
  %v87 = vpop.f32.mrf.mxu0
  %v88 = vadd.f32 %v47, %v87
  %89 = vmatmul.f32.gmra.mxu0 %v63
  %v90 = vpop.f32.mrf.mxu0
  %v91 = vadd.f32 %v52, %v90
  %92 = vdwg.mxu0
  %93 = vmatpush.msra.mxu0 0.0
  %94 = vmatpush.msra.mxu0 0.0
  %95 = vmatpush.msra.mxu0 0.0
  %96 = vmatpush.msra.mxu0 0.0
  %97 = vmatpush.msra.mxu0 0.0
  %98 = vmatpush.msra.mxu0 0.0
  %99 = vmatpush.msra.mxu0 0.0
  %100 = vmatpush.msra.mxu0 0.0
  %101 = vmatpush.msra.mxu0 0.0
  %102 = vmatpush.msra.mxu0 0.0
  %103 = vmatpush.msra.mxu0 0.0
  %104 = vmatpush.msra.mxu0 0.0
  %105 = vmatpush.msra.mxu0 0.0
  %106 = vmatpush.msra.mxu0 0.0
  %107 = vmatpush.msra.mxu0 0.0
  %108 = vmatpush.msra.mxu0 %v68
  %109 = vmatmul.f32.gmra.mxu0 %v60
  %v110 = vpop.f32.mrf.mxu0
  %v111 = vadd.f32 %v47, %v110
  %112 = vmatmul.f32.gmra.mxu0 %v63
  %v113 = vpop.f32.mrf.mxu0
  %v114 = vadd.f32 %v52, %v113
  %115 = vdwg.mxu0
  %v116 = vxor.u32 %v88, 2147483648
  %v117 = vxor.u32 %v111, 2147483648
  %v118 = vxor.u32 %v91, 2147483648
  %v119 = vxor.u32 %v114, 2147483648
  %v120 = vmul.f32 %v116, 1.442695
  %v121 = vpow.pop %v120
  %v122 = vmul.f32 %v117, 1.442695
  %v123 = vpow.pop %v122
  %v124 = vmul.f32 %v118, 1.442695
  %v125 = vpow.pop %v124
  %v126 = vmul.f32 %v119, 1.442695
  %v127 = vpow.pop %v126
  %v128 = vadd.f32 %v121, 1.0
  %v129 = vadd.f32 %v123, 1.0
  %v130 = vadd.f32 %v125, 1.0
  %v131 = vadd.f32 %v127, 1.0
  %v132 = vrcp.pop %v128
  %v133 = vmul.f32 %v128, %v132
  %v134 = vsub.f32 1.0, %v133
  %v135 = vmul.f32 %v132, %v134
  %v136 = vadd.f32 %v132, %v135
  %vm137 = vweird.f32 %v128
  %vm138 = vweird.f32 %v132
  %vm139 = vmor %vm137, %vm138
  %v140 = vsel %vm139, %v132, %v136
  %v141 = vand.u32 2147483647, %v128
  %vm142 = vcmp.eq.f32.partialorder %v141, 8.507059e+37
  %v143 = vand.u32 %v128, 2147483648
  %v144 = vor.u32 1.1754944e-38, %v143
  %v145 = vsel %vm142, %v144, %v140
  %v146 = vmul.f32 1.0, %v145
  %v147 = vrcp.pop %v129
  %v148 = vmul.f32 %v129, %v147
  %v149 = vsub.f32 1.0, %v148
  %v150 = vmul.f32 %v147, %v149
  %v151 = vadd.f32 %v147, %v150
  %vm152 = vweird.f32 %v129
  %vm153 = vweird.f32 %v147
  %vm154 = vmor %vm152, %vm153
  %v155 = vsel %vm154, %v147, %v151
  %v156 = vand.u32 2147483647, %v129
  %vm157 = vcmp.eq.f32.partialorder %v156, 8.507059e+37
  %v158 = vand.u32 %v129, 2147483648
  %v159 = vor.u32 1.1754944e-38, %v158
  %v160 = vsel %vm157, %v159, %v155
  %v161 = vmul.f32 1.0, %v160
  %v162 = vrcp.pop %v130
  %v163 = vmul.f32 %v130, %v162
  %v164 = vsub.f32 1.0, %v163
  %v165 = vmul.f32 %v162, %v164
  %v166 = vadd.f32 %v162, %v165
  %vm167 = vweird.f32 %v130
  %vm168 = vweird.f32 %v162
  %vm169 = vmor %vm167, %vm168
  %v170 = vsel %vm169, %v162, %v166
  %v171 = vand.u32 2147483647, %v130
  %vm172 = vcmp.eq.f32.partialorder %v171, 8.507059e+37
  %v173 = vand.u32 %v130, 2147483648
  %v174 = vor.u32 1.1754944e-38, %v173
  %v175 = vsel %vm172, %v174, %v170
  %v176 = vmul.f32 1.0, %v175
  %v177 = vrcp.pop %v131
  %v178 = vmul.f32 %v131, %v177
  %v179 = vsub.f32 1.0, %v178
  %v180 = vmul.f32 %v177, %v179
  %v181 = vadd.f32 %v177, %v180
  %vm182 = vweird.f32 %v131
  %vm183 = vweird.f32 %v177
  %vm184 = vmor %vm182, %vm183
  %v185 = vsel %vm184, %v177, %v181
  %v186 = vand.u32 2147483647, %v131
  %vm187 = vcmp.eq.f32.partialorder %v186, 8.507059e+37
  %v188 = vand.u32 %v131, 2147483648
  %v189 = vor.u32 1.1754944e-38, %v188
  %v190 = vsel %vm187, %v189, %v185
  %v191 = vmul.f32 1.0, %v190
  %v192 = vmul.f32 %v88, %v146
  %v193 = vmul.f32 %v111, %v161
  %v194 = vmul.f32 %v91, %v176
  %v195 = vmul.f32 %v114, %v191
  %196 = vrot.lane.b32.xlu0 %v192, 17
  %v197 = vpop.permute.xlu0 %196
  %198 = vrot.lane.b32.xlu0 %v194, 17
  %v199 = vpop.permute.xlu0 %198
  %200 = vrot.lane.b32.xlu0 %v193, 17
  %v201 = vpop.permute.xlu0 %200
  %202 = vrot.lane.b32.xlu0 %v195, 17
  %v203 = vpop.permute.xlu0 %202
  %v204 = vlaneseq
  %v205 = vand.u32 %v204, 127
  %vm206 = vcmp.lt.s32.totalorder %v205, 17
  %v207 = vsel %vm206, %v197, %v201
  %v208 = vsel %vm206, %v199, %v203
  %v209 = vsel %vm206, %v201, %v197
  %v210 = vsel %vm206, %v203, %v199
  %v211 = vperm.slane %v39, 0
  %v212 = vperm.slane %v40, 0
  %v213 = vmul.f32 %v209, %v211
  %v214 = vmul.f32 %v207, %v212
  %v215 = vmul.f32 %v210, %v211
  %v216 = vmul.f32 %v208, %v212
  %218 = vset.pattern.permute.xlu0 0
  %219 = vperm.xlu0 %218, %v36
  %v220 = vpop.permute.xlu0 %219
  %223 = vset.pattern.permute.xlu0 0
  %224 = vperm.xlu0 %223, %v37
  %v225 = vpop.permute.xlu0 %224
  %v227 = vmul.f32 %v213, %v220
  %v228 = vmul.f32 %v214, %v220
  %v229 = vmul.f32 %v215, %v225
  %v230 = vmul.f32 %v216, %v225
  %v231 = vadd.f32 %v227, 0.0
  %v232 = vadd.f32 %v228, 0.0
  %v233 = vadd.f32 %v229, 0.0
  %v234 = vadd.f32 %v230, 0.0
  %235 = vrot.lane.b32.xlu0 %v192, 16
  %v236 = vpop.permute.xlu0 %235
  %237 = vrot.lane.b32.xlu0 %v194, 16
  %v238 = vpop.permute.xlu0 %237
  %239 = vrot.lane.b32.xlu0 %v193, 16
  %v240 = vpop.permute.xlu0 %239
  %241 = vrot.lane.b32.xlu0 %v195, 16
  %v242 = vpop.permute.xlu0 %241
  %vm243 = vcmp.lt.s32.totalorder %v205, 16
  %v244 = vsel %vm243, %v236, %v240
  %v245 = vsel %vm243, %v238, %v242
  %v246 = vsel %vm243, %v240, %v236
  %v247 = vsel %vm243, %v242, %v238
  %v248 = vperm.slane %v39, 1
  %v249 = vperm.slane %v40, 1
  %v250 = vmul.f32 %v246, %v248
  %v251 = vmul.f32 %v244, %v249
  %v252 = vmul.f32 %v247, %v248
  %v253 = vmul.f32 %v245, %v249
  %254 = vset.pattern.permute.xlu0 1
  %255 = vperm.xlu0 %254, %v36
  %v256 = vpop.permute.xlu0 %255
  %258 = vset.pattern.permute.xlu0 1
  %259 = vperm.xlu0 %258, %v37
  %v260 = vpop.permute.xlu0 %259
  %v262 = vmul.f32 %v250, %v256
  %v263 = vmul.f32 %v251, %v256
  %v264 = vmul.f32 %v252, %v260
  %v265 = vmul.f32 %v253, %v260
  %v266 = vadd.f32 %v231, %v262
  %v267 = vadd.f32 %v232, %v263
  %v268 = vadd.f32 %v233, %v264
  %v269 = vadd.f32 %v234, %v265
  %270 = vrot.lane.b32.xlu0 %v192, 15
  %v271 = vpop.permute.xlu0 %270
  %272 = vrot.lane.b32.xlu0 %v194, 15
  %v273 = vpop.permute.xlu0 %272
  %274 = vrot.lane.b32.xlu0 %v193, 15
  %v275 = vpop.permute.xlu0 %274
  %276 = vrot.lane.b32.xlu0 %v195, 15
  %v277 = vpop.permute.xlu0 %276
  %vm278 = vcmp.lt.s32.totalorder %v205, 15
  %v279 = vsel %vm278, %v271, %v275
  %v280 = vsel %vm278, %v273, %v277
  %v281 = vsel %vm278, %v275, %v271
  %v282 = vsel %vm278, %v277, %v273
  %v283 = vperm.slane %v39, 2
  %v284 = vperm.slane %v40, 2
  %v285 = vmul.f32 %v281, %v283
  %v286 = vmul.f32 %v279, %v284
  %v287 = vmul.f32 %v282, %v283
  %v288 = vmul.f32 %v280, %v284
  %289 = vset.pattern.permute.xlu0 2
  %290 = vperm.xlu0 %289, %v36
  %v291 = vpop.permute.xlu0 %290
  %293 = vset.pattern.permute.xlu0 2
  %294 = vperm.xlu0 %293, %v37
  %v295 = vpop.permute.xlu0 %294
  %v297 = vmul.f32 %v285, %v291
  %v298 = vmul.f32 %v286, %v291
  %v299 = vmul.f32 %v287, %v295
  %v300 = vmul.f32 %v288, %v295
  %v301 = vadd.f32 %v266, %v297
  %v302 = vadd.f32 %v267, %v298
  %v303 = vadd.f32 %v268, %v299
  %v304 = vadd.f32 %v269, %v300
  %305 = vrot.lane.b32.xlu0 %v192, 1
  %v306 = vpop.permute.xlu0 %305
  %307 = vrot.lane.b32.xlu0 %v194, 1
  %v308 = vpop.permute.xlu0 %307
  %309 = vrot.lane.b32.xlu0 %v193, 1
  %v310 = vpop.permute.xlu0 %309
  %311 = vrot.lane.b32.xlu0 %v195, 1
  %v312 = vpop.permute.xlu0 %311
  %vm313 = vcmp.lt.s32.totalorder %v205, 1
  %v314 = vsel %vm313, %v306, %v310
  %v315 = vsel %vm313, %v308, %v312
  %v316 = vsel %vm313, %v310, %v306
  %v317 = vsel %vm313, %v312, %v308
  %v318 = vperm.slane %v39, 3
  %v319 = vperm.slane %v40, 3
  %v320 = vmul.f32 %v316, %v318
  %v321 = vmul.f32 %v314, %v319
  %v322 = vmul.f32 %v317, %v318
  %v323 = vmul.f32 %v315, %v319
  %324 = vset.pattern.permute.xlu0 3
  %325 = vperm.xlu0 %324, %v36
  %v326 = vpop.permute.xlu0 %325
  %328 = vset.pattern.permute.xlu0 3
  %329 = vperm.xlu0 %328, %v37
  %v330 = vpop.permute.xlu0 %329
  %v332 = vmul.f32 %v320, %v326
  %v333 = vmul.f32 %v321, %v326
  %v334 = vmul.f32 %v322, %v330
  %v335 = vmul.f32 %v323, %v330
  %v336 = vadd.f32 %v301, %v332
  %v337 = vadd.f32 %v302, %v333
  %v338 = vadd.f32 %v303, %v334
  %v339 = vadd.f32 %v304, %v335
  %340 = vset.pattern.permute.xlu0 4
  %341 = vperm.xlu0 %340, %v36
  %v342 = vpop.permute.xlu0 %341
  %344 = vset.pattern.permute.xlu0 4
  %345 = vperm.xlu0 %344, %v37
  %v346 = vpop.permute.xlu0 %345
  %v348 = vmul.f32 %v192, %v342
  %v349 = vmul.f32 %v193, %v342
  %v350 = vmul.f32 %v194, %v346
  %v351 = vmul.f32 %v195, %v346
  %v352 = vadd.f32 %v336, %v348
  %v353 = vadd.f32 %v337, %v349
  %v354 = vadd.f32 %v338, %v350
  %v355 = vadd.f32 %v339, %v351
  %356 = vrot.lane.b32.xlu0 %v192, 127
  %v357 = vpop.permute.xlu0 %356
  %358 = vrot.lane.b32.xlu0 %v194, 127
  %v359 = vpop.permute.xlu0 %358
  %360 = vrot.lane.b32.xlu0 %v193, 127
  %v361 = vpop.permute.xlu0 %360
  %362 = vrot.lane.b32.xlu0 %v195, 127
  %v363 = vpop.permute.xlu0 %362
  %vm364 = vcmp.lt.s32.totalorder %v205, 127
  %v365 = vsel %vm364, %v357, %v361
  %v366 = vsel %vm364, %v359, %v363
  %v367 = vsel %vm364, %v361, %v357
  %v368 = vsel %vm364, %v363, %v359
  %v369 = vperm.slane %v39, 5
  %v370 = vperm.slane %v40, 5
  %v371 = vmul.f32 %v365, %v369
  %v372 = vmul.f32 %v367, %v370
  %v373 = vmul.f32 %v366, %v369
  %v374 = vmul.f32 %v368, %v370
  %375 = vset.pattern.permute.xlu0 5
  %376 = vperm.xlu0 %375, %v36
  %v377 = vpop.permute.xlu0 %376
  %379 = vset.pattern.permute.xlu0 5
  %380 = vperm.xlu0 %379, %v37
  %v381 = vpop.permute.xlu0 %380
  %v383 = vmul.f32 %v371, %v377
  %v384 = vmul.f32 %v372, %v377
  %v385 = vmul.f32 %v373, %v381
  %v386 = vmul.f32 %v374, %v381
  %v387 = vadd.f32 %v352, %v383
  %v388 = vadd.f32 %v353, %v384
  %v389 = vadd.f32 %v354, %v385
  %v390 = vadd.f32 %v355, %v386
  %391 = vrot.lane.b32.xlu0 %v192, 113
  %v392 = vpop.permute.xlu0 %391
  %393 = vrot.lane.b32.xlu0 %v194, 113
  %v394 = vpop.permute.xlu0 %393
  %395 = vrot.lane.b32.xlu0 %v193, 113
  %v396 = vpop.permute.xlu0 %395
  %397 = vrot.lane.b32.xlu0 %v195, 113
  %v398 = vpop.permute.xlu0 %397
  %vm399 = vcmp.lt.s32.totalorder %v205, 113
  %v400 = vsel %vm399, %v392, %v396
  %v401 = vsel %vm399, %v394, %v398
  %v402 = vsel %vm399, %v396, %v392
  %v403 = vsel %vm399, %v398, %v394
  %v404 = vperm.slane %v39, 6
  %v405 = vperm.slane %v40, 6
  %v406 = vmul.f32 %v400, %v404
  %v407 = vmul.f32 %v402, %v405
  %v408 = vmul.f32 %v401, %v404
  %v409 = vmul.f32 %v403, %v405
  %410 = vset.pattern.permute.xlu0 6
  %411 = vperm.xlu0 %410, %v36
  %v412 = vpop.permute.xlu0 %411
  %414 = vset.pattern.permute.xlu0 6
  %415 = vperm.xlu0 %414, %v37
  %v416 = vpop.permute.xlu0 %415
  %v418 = vmul.f32 %v406, %v412
  %v419 = vmul.f32 %v407, %v412
  %v420 = vmul.f32 %v408, %v416
  %v421 = vmul.f32 %v409, %v416
  %v422 = vadd.f32 %v387, %v418
  %v423 = vadd.f32 %v388, %v419
  %v424 = vadd.f32 %v389, %v420
  %v425 = vadd.f32 %v390, %v421
  %426 = vrot.lane.b32.xlu0 %v192, 112
  %v427 = vpop.permute.xlu0 %426
  %428 = vrot.lane.b32.xlu0 %v194, 112
  %v429 = vpop.permute.xlu0 %428
  %430 = vrot.lane.b32.xlu0 %v193, 112
  %v431 = vpop.permute.xlu0 %430
  %432 = vrot.lane.b32.xlu0 %v195, 112
  %v433 = vpop.permute.xlu0 %432
  %vm434 = vcmp.lt.s32.totalorder %v205, 112
  %v435 = vsel %vm434, %v427, %v431
  %v436 = vsel %vm434, %v429, %v433
  %v437 = vsel %vm434, %v431, %v427
  %v438 = vsel %vm434, %v433, %v429
  %v439 = vperm.slane %v39, 7
  %v440 = vperm.slane %v40, 7
  %v441 = vmul.f32 %v435, %v439
  %v442 = vmul.f32 %v437, %v440
  %v443 = vmul.f32 %v436, %v439
  %v444 = vmul.f32 %v438, %v440
  %445 = vset.pattern.permute.xlu0 7
  %446 = vperm.xlu0 %445, %v36
  %v447 = vpop.permute.xlu0 %446
  %449 = vset.pattern.permute.xlu0 7
  %450 = vperm.xlu0 %449, %v37
  %v451 = vpop.permute.xlu0 %450
  %v453 = vmul.f32 %v441, %v447
  %v454 = vmul.f32 %v442, %v447
  %v455 = vmul.f32 %v443, %v451
  %v456 = vmul.f32 %v444, %v451
  %v457 = vadd.f32 %v422, %v453
  %v458 = vadd.f32 %v423, %v454
  %v459 = vadd.f32 %v424, %v455
  %v460 = vadd.f32 %v425, %v456
  %461 = vrot.lane.b32.xlu0 %v192, 111
  %v462 = vpop.permute.xlu0 %461
  %463 = vrot.lane.b32.xlu0 %v194, 111
  %v464 = vpop.permute.xlu0 %463
  %465 = vrot.lane.b32.xlu0 %v193, 111
  %v466 = vpop.permute.xlu0 %465
  %467 = vrot.lane.b32.xlu0 %v195, 111
  %v468 = vpop.permute.xlu0 %467
  %vm469 = vcmp.lt.s32.totalorder %v205, 111
  %v470 = vsel %vm469, %v462, %v466
  %v471 = vsel %vm469, %v464, %v468
  %v472 = vsel %vm469, %v466, %v462
  %v473 = vsel %vm469, %v468, %v464
  %v474 = vperm.slane %v41, 0
  %v475 = vperm.slane %v42, 0
  %v476 = vmul.f32 %v470, %v474
  %v477 = vmul.f32 %v472, %v475
  %v478 = vmul.f32 %v471, %v474
  %v479 = vmul.f32 %v473, %v475
  %480 = vset.pattern.permute.xlu0 8
  %481 = vperm.xlu0 %480, %v36
  %v482 = vpop.permute.xlu0 %481
  %484 = vset.pattern.permute.xlu0 8
  %485 = vperm.xlu0 %484, %v37
  %v486 = vpop.permute.xlu0 %485
  %v488 = vmul.f32 %v476, %v482
  %v489 = vmul.f32 %v477, %v482
  %v490 = vmul.f32 %v478, %v486
  %v491 = vmul.f32 %v479, %v486
  %v492 = vadd.f32 %v457, %v488
  %v493 = vadd.f32 %v458, %v489
  %v494 = vadd.f32 %v459, %v490
  %v495 = vadd.f32 %v460, %v491
  %496 = vset.pattern.permute.xlu0 1
  %497 = vperm.xlu0 %496, %v29
  %v498 = vpop.permute.xlu0 %497
  %500 = vset.pattern.permute.xlu0 1
  %501 = vperm.xlu0 %500, %v30
  %v502 = vpop.permute.xlu0 %501
  %v504 = vadd.f32 %v492, %v498
  %v505 = vadd.f32 %v493, %v498
  %v506 = vadd.f32 %v494, %v502
  %v507 = vadd.f32 %v495, %v502
  %v508 = vxor.u32 %v504, 2147483648
  %v509 = vxor.u32 %v505, 2147483648
  %v510 = vxor.u32 %v506, 2147483648
  %v511 = vxor.u32 %v507, 2147483648
  %v512 = vmul.f32 %v508, 1.442695
  %v513 = vpow.pop %v512
  %v514 = vmul.f32 %v509, 1.442695
  %v515 = vpow.pop %v514
  %v516 = vmul.f32 %v510, 1.442695
  %v517 = vpow.pop %v516
  %v518 = vmul.f32 %v511, 1.442695
  %v519 = vpow.pop %v518
  %v520 = vadd.f32 %v513, 1.0
  %v521 = vadd.f32 %v515, 1.0
  %v522 = vadd.f32 %v517, 1.0
  %v523 = vadd.f32 %v519, 1.0
  %v524 = vrcp.pop %v520
  %v525 = vmul.f32 %v520, %v524
  %v526 = vsub.f32 1.0, %v525
  %v527 = vmul.f32 %v524, %v526
  %v528 = vadd.f32 %v524, %v527
  %vm529 = vweird.f32 %v520
  %vm530 = vweird.f32 %v524
  %vm531 = vmor %vm529, %vm530
  %v532 = vsel %vm531, %v524, %v528
  %v533 = vand.u32 2147483647, %v520
  %vm534 = vcmp.eq.f32.partialorder %v533, 8.507059e+37
  %v535 = vand.u32 %v520, 2147483648
  %v536 = vor.u32 1.1754944e-38, %v535
  %v537 = vsel %vm534, %v536, %v532
  %v538 = vmul.f32 1.0, %v537
  %v539 = vrcp.pop %v521
  %v540 = vmul.f32 %v521, %v539
  %v541 = vsub.f32 1.0, %v540
  %v542 = vmul.f32 %v539, %v541
  %v543 = vadd.f32 %v539, %v542
  %vm544 = vweird.f32 %v521
  %vm545 = vweird.f32 %v539
  %vm546 = vmor %vm544, %vm545
  %v547 = vsel %vm546, %v539, %v543
  %v548 = vand.u32 2147483647, %v521
  %vm549 = vcmp.eq.f32.partialorder %v548, 8.507059e+37
  %v550 = vand.u32 %v521, 2147483648
  %v551 = vor.u32 1.1754944e-38, %v550
  %v552 = vsel %vm549, %v551, %v547
  %v553 = vmul.f32 1.0, %v552
  %v554 = vrcp.pop %v522
  %v555 = vmul.f32 %v522, %v554
  %v556 = vsub.f32 1.0, %v555
  %v557 = vmul.f32 %v554, %v556
  %v558 = vadd.f32 %v554, %v557
  %vm559 = vweird.f32 %v522
  %vm560 = vweird.f32 %v554
  %vm561 = vmor %vm559, %vm560
  %v562 = vsel %vm561, %v554, %v558
  %v563 = vand.u32 2147483647, %v522
  %vm564 = vcmp.eq.f32.partialorder %v563, 8.507059e+37
  %v565 = vand.u32 %v522, 2147483648
  %v566 = vor.u32 1.1754944e-38, %v565
  %v567 = vsel %vm564, %v566, %v562
  %v568 = vmul.f32 1.0, %v567
  %v569 = vrcp.pop %v523
  %v570 = vmul.f32 %v523, %v569
  %v571 = vsub.f32 1.0, %v570
  %v572 = vmul.f32 %v569, %v571
  %v573 = vadd.f32 %v569, %v572
  %vm574 = vweird.f32 %v523
  %vm575 = vweird.f32 %v569
  %vm576 = vmor %vm574, %vm575
  %v577 = vsel %vm576, %v569, %v573
  %v578 = vand.u32 2147483647, %v523
  %vm579 = vcmp.eq.f32.partialorder %v578, 8.507059e+37
  %v580 = vand.u32 %v523, 2147483648
  %v581 = vor.u32 1.1754944e-38, %v580
  %v582 = vsel %vm579, %v581, %v577
  %v583 = vmul.f32 1.0, %v582
  %v584 = vmul.f32 %v504, %v538
  %v585 = vmul.f32 %v505, %v553
  %v586 = vmul.f32 %v506, %v568
  %v587 = vmul.f32 %v507, %v583
  %v588 = vadd.f32 %v584, %v585
  %589 = vadd.xlane.f32.xlu0 %v588
  %v590 = vpop.xlane.xlu0 %589
  %v591 = vadd.f32 %v586, %v587
  %592 = vadd.xlane.f32.xlu0 %v591
  %v593 = vpop.xlane.xlu0 %592
  %v594 = vrcp.pop 256.0
  %v595 = vmul.f32 256.0, %v594
  %v596 = vsub.f32 1.0, %v595
  %v597 = vmul.f32 %v594, %v596
  %v598 = vadd.f32 %v594, %v597
  %vm599 = vweird.f32 %v594
  %v600 = vsel %vm599, %v594, %v598
  %v601 = vmul.f32 %v590, %v600
  %v602 = vmul.f32 %v593, %v600
  %v603 = vmul.f32 %v32, %v601
  %v604 = vmul.f32 %v33, %v602
  %v605 = vsel %vm58, %v603, 0.0
  %v606 = vsel %vm58, %v604, 0.0
  %v607 = vadd.f32 %v605, %v606
  %v608 = vrot.slane %v607, 4
  %v609 = vadd.f32 %v607, %v608
  %v610 = vrot.slane %v609, 2
  %v611 = vadd.f32 %v609, %v610
  %v612 = vrot.slane %v611, 1
  %v613 = vadd.f32 %v611, %v612
  %v614 = vld [vmem:[%s5] sm:$0x1]
  %v615 = vadd.f32 %v613, %v614
  %v616 = vxor.u32 %v615, 2147483648
  %v617 = vmul.f32 %v616, 1.442695
  %v618 = vpow.pop %v617
  %v619 = vadd.f32 %v618, 1.0
  %v620 = vrcp.pop %v619
  %v621 = vmul.f32 %v619, %v620
  %v622 = vsub.f32 1.0, %v621
  %v623 = vmul.f32 %v620, %v622
  %v624 = vadd.f32 %v620, %v623
  %vm625 = vweird.f32 %v619
  %vm626 = vweird.f32 %v620
  %vm627 = vmor %vm625, %vm626
  %v628 = vsel %vm627, %v620, %v624
  %v629 = vand.u32 2147483647, %v619
  %vm630 = vcmp.eq.f32.partialorder %v629, 8.507059e+37
  %v631 = vand.u32 %v619, 2147483648
  %v632 = vor.u32 1.1754944e-38, %v631
  %v633 = vsel %vm630, %v632, %v628
  %v634 = vmul.f32 1.0, %v633
  %v635 = vmul.f32 %v615, %v634
  %v636 = vperm.slane %v635, 0
  %638 = vrot.lane.b32.xlu0 %v636, 4
  %v639 = vpop.permute.xlu0 %638
  %v641 = vmul.f32 %v32, %v639
  %v642 = vmul.f32 %v33, %v639
  %645 = vrot.lane.b32.xlu0 %v641, 124
  %v646 = vpop.permute.xlu0 %645
  %647 = vrot.lane.b32.xlu0 %v642, 124
  %v648 = vpop.permute.xlu0 %647
  %v651 = vsel %vm58, %v646, 0.0
  %652 = vadd.xlane.f32.xlu0 %v651
  %v653 = vpop.xlane.xlu0 %652
  %v654 = vsel %vm58, %v648, 0.0
  %655 = vadd.xlane.f32.xlu0 %v654
  %v656 = vpop.xlane.xlu0 %655
  %v657 = vadd.f32 %v653, %v29
  %v658 = vadd.f32 %v656, %v30
  %v659 = vxor.u32 %v657, 2147483648
  %v660 = vxor.u32 %v658, 2147483648
  %v661 = vmul.f32 %v659, 1.442695
  %v662 = vpow.pop %v661
  %v663 = vmul.f32 %v660, 1.442695
  %v664 = vpow.pop %v663
  %v665 = vadd.f32 %v662, 1.0
  %v666 = vadd.f32 %v664, 1.0
  %v667 = vrcp.pop %v665
  %v668 = vmul.f32 %v665, %v667
  %v669 = vsub.f32 1.0, %v668
  %v670 = vmul.f32 %v667, %v669
  %v671 = vadd.f32 %v667, %v670
  %vm672 = vweird.f32 %v665
  %vm673 = vweird.f32 %v667
  %vm674 = vmor %vm672, %vm673
  %v675 = vsel %vm674, %v667, %v671
  %v676 = vand.u32 2147483647, %v665
  %vm677 = vcmp.eq.f32.partialorder %v676, 8.507059e+37
  %v678 = vand.u32 %v665, 2147483648
  %v679 = vor.u32 1.1754944e-38, %v678
  %v680 = vsel %vm677, %v679, %v675
  %v681 = vmul.f32 1.0, %v680
  %v682 = vrcp.pop %v666
  %v683 = vmul.f32 %v666, %v682
  %v684 = vsub.f32 1.0, %v683
  %v685 = vmul.f32 %v682, %v684
  %v686 = vadd.f32 %v682, %v685
  %vm687 = vweird.f32 %v666
  %vm688 = vweird.f32 %v682
  %vm689 = vmor %vm687, %vm688
  %v690 = vsel %vm689, %v682, %v686
  %v691 = vand.u32 2147483647, %v666
  %vm692 = vcmp.eq.f32.partialorder %v691, 8.507059e+37
  %v693 = vand.u32 %v666, 2147483648
  %v694 = vor.u32 1.1754944e-38, %v693
  %v695 = vsel %vm692, %v694, %v690
  %v696 = vmul.f32 1.0, %v695
  %698 = vset.pattern.permute.xlu0 2
  %699 = vperm.xlu0 %698, %v681
  %v700 = vpop.permute.xlu0 %699
  %703 = vset.pattern.permute.xlu0 2
  %704 = vperm.xlu0 %703, %v696
  %v705 = vpop.permute.xlu0 %704
  %v707 = vmul.f32 %v584, %v700
  %v708 = vmul.f32 %v585, %v700
  %v709 = vmul.f32 %v586, %v705
  %v710 = vmul.f32 %v587, %v705
  %712 = vset.pattern.permute.xlu0 3
  %713 = vperm.xlu0 %712, %v31
  %v714 = vpop.permute.xlu0 %713
  %vm716 = vcmask 130048
  %v718 = vsel %vm716, %v38, 0
  %720 = vmatpush.msra.mxu0 0.0
  %721 = vmatpush.msra.mxu0 0.0
  %722 = vmatpush.msra.mxu0 0.0
  %723 = vmatpush.msra.mxu0 0.0
  %724 = vmatpush.msra.mxu0 0.0
  %725 = vmatpush.msra.mxu0 0.0
  %726 = vmatpush.msra.mxu0 0.0
  %727 = vmatpush.msra.mxu0 0.0
  %728 = vmatpush.msra.mxu0 0.0
  %729 = vmatpush.msra.mxu0 0.0
  %730 = vmatpush.msra.mxu0 0.0
  %731 = vmatpush.msra.mxu0 0.0
  %732 = vmatpush.msra.mxu0 0.0
  %733 = vmatpush.msra.mxu0 0.0
  %734 = vmatpush.msra.mxu0 %v709
  %735 = vmatpush.msra.mxu0 %v707
  %736 = vmatmul.f32.gmra.mxu0 %v718
  %v737 = vpop.f32.mrf.mxu0
  %v738 = vadd.f32 %v714, %v737
  %739 = vdwg.mxu0
  %740 = vmatpush.msra.mxu0 0.0
  %741 = vmatpush.msra.mxu0 0.0
  %742 = vmatpush.msra.mxu0 0.0
  %743 = vmatpush.msra.mxu0 0.0
  %744 = vmatpush.msra.mxu0 0.0
  %745 = vmatpush.msra.mxu0 0.0
  %746 = vmatpush.msra.mxu0 0.0
  %747 = vmatpush.msra.mxu0 0.0
  %748 = vmatpush.msra.mxu0 0.0
  %749 = vmatpush.msra.mxu0 0.0
  %750 = vmatpush.msra.mxu0 0.0
  %751 = vmatpush.msra.mxu0 0.0
  %752 = vmatpush.msra.mxu0 0.0
  %753 = vmatpush.msra.mxu0 0.0
  %754 = vmatpush.msra.mxu0 %v710
  %755 = vmatpush.msra.mxu0 %v708
  %756 = vmatmul.f32.gmra.mxu0 %v718
  %v757 = vpop.f32.mrf.mxu0
  %v758 = vadd.f32 %v714, %v757
  %759 = vdwg.mxu0
  %760 = vst [vmem:[#allocation1] ss:$2 sm:$0xff] %v43
  %v761 = vld.sshfl [vmem:[#allocation1] sm:$0xff pattern:$0x75316420]
  %v762 = vld.sshfl [vmem:[#allocation1 + $0x8] sm:$0xff pattern:$0x75316420]
  %v765 = vadd.f32 %v738, %v761
  %v766 = vadd.f32 %v758, %v762
  %v769 = vrot.slane %v766, 4
  %v770 = vsel %vm65, %v765, %v769
  %772 = vst [vmem:[%s8] sm:$0xff] %v770
  %s773 = scalar_lea.vmem %s0, 8
  %v774 = vld [vmem:[%s773] sm:$0xff]
  %776 = vst [vmem:[#allocation1] ss:$2 sm:$0xff] %v774
  %v777 = vld.sshfl [vmem:[#allocation1] sm:$0xff pattern:$0x75316420]
  %v778 = vld.sshfl [vmem:[#allocation1 + $0x8] sm:$0xff pattern:$0x75316420]
  %v779 = vsel %vm65, %v777, 0
  %v781 = vsel %vm65, %v778, 0
  %783 = vmatpush.msra.mxu0 0.0
  %784 = vmatpush.msra.mxu0 0.0
  %785 = vmatpush.msra.mxu0 0.0
  %786 = vmatpush.msra.mxu0 0.0
  %787 = vmatpush.msra.mxu0 0.0
  %788 = vmatpush.msra.mxu0 0.0
  %789 = vmatpush.msra.mxu0 0.0
  %790 = vmatpush.msra.mxu0 0.0
  %791 = vmatpush.msra.mxu0 0.0
  %792 = vmatpush.msra.mxu0 0.0
  %793 = vmatpush.msra.mxu0 0.0
  %794 = vmatpush.msra.mxu0 0.0
  %795 = vmatpush.msra.mxu0 0.0
  %796 = vmatpush.msra.mxu0 0.0
  %797 = vmatpush.msra.mxu0 0.0
  %798 = vmatpush.msra.mxu0 %v779
  %799 = vmatmul.f32.gmra.mxu0 %v60
  %v800 = vpop.f32.mrf.mxu0
  %v801 = vadd.f32 %v47, %v800
  %802 = vmatmul.f32.gmra.mxu0 %v63
  %v803 = vpop.f32.mrf.mxu0
  %v804 = vadd.f32 %v52, %v803
  %805 = vdwg.mxu0
  %806 = vmatpush.msra.mxu0 0.0
  %807 = vmatpush.msra.mxu0 0.0
  %808 = vmatpush.msra.mxu0 0.0
  %809 = vmatpush.msra.mxu0 0.0
  %810 = vmatpush.msra.mxu0 0.0
  %811 = vmatpush.msra.mxu0 0.0
  %812 = vmatpush.msra.mxu0 0.0
  %813 = vmatpush.msra.mxu0 0.0
  %814 = vmatpush.msra.mxu0 0.0
  %815 = vmatpush.msra.mxu0 0.0
  %816 = vmatpush.msra.mxu0 0.0
  %817 = vmatpush.msra.mxu0 0.0
  %818 = vmatpush.msra.mxu0 0.0
  %819 = vmatpush.msra.mxu0 0.0
  %820 = vmatpush.msra.mxu0 0.0
  %821 = vmatpush.msra.mxu0 %v781
  %822 = vmatmul.f32.gmra.mxu0 %v60
  %v823 = vpop.f32.mrf.mxu0
  %v824 = vadd.f32 %v47, %v823
  %825 = vmatmul.f32.gmra.mxu0 %v63
  %v826 = vpop.f32.mrf.mxu0
  %v827 = vadd.f32 %v52, %v826
  %828 = vdwg.mxu0
  %v829 = vxor.u32 %v801, 2147483648
  %v830 = vxor.u32 %v824, 2147483648
  %v831 = vxor.u32 %v804, 2147483648
  %v832 = vxor.u32 %v827, 2147483648
  %v833 = vmul.f32 %v829, 1.442695
  %v834 = vpow.pop %v833
  %v835 = vmul.f32 %v830, 1.442695
  %v836 = vpow.pop %v835
  %v837 = vmul.f32 %v831, 1.442695
  %v838 = vpow.pop %v837
  %v839 = vmul.f32 %v832, 1.442695
  %v840 = vpow.pop %v839
  %v841 = vadd.f32 %v834, 1.0
  %v842 = vadd.f32 %v836, 1.0
  %v843 = vadd.f32 %v838, 1.0
  %v844 = vadd.f32 %v840, 1.0
  %v845 = vrcp.pop %v841
  %v846 = vmul.f32 %v841, %v845
  %v847 = vsub.f32 1.0, %v846
  %v848 = vmul.f32 %v845, %v847
  %v849 = vadd.f32 %v845, %v848
  %vm850 = vweird.f32 %v841
  %vm851 = vweird.f32 %v845
  %vm852 = vmor %vm850, %vm851
  %v853 = vsel %vm852, %v845, %v849
  %v854 = vand.u32 2147483647, %v841
  %vm855 = vcmp.eq.f32.partialorder %v854, 8.507059e+37
  %v856 = vand.u32 %v841, 2147483648
  %v857 = vor.u32 1.1754944e-38, %v856
  %v858 = vsel %vm855, %v857, %v853
  %v859 = vmul.f32 1.0, %v858
  %v860 = vrcp.pop %v842
  %v861 = vmul.f32 %v842, %v860
  %v862 = vsub.f32 1.0, %v861
  %v863 = vmul.f32 %v860, %v862
  %v864 = vadd.f32 %v860, %v863
  %vm865 = vweird.f32 %v842
  %vm866 = vweird.f32 %v860
  %vm867 = vmor %vm865, %vm866
  %v868 = vsel %vm867, %v860, %v864
  %v869 = vand.u32 2147483647, %v842
  %vm870 = vcmp.eq.f32.partialorder %v869, 8.507059e+37
  %v871 = vand.u32 %v842, 2147483648
  %v872 = vor.u32 1.1754944e-38, %v871
  %v873 = vsel %vm870, %v872, %v868
  %v874 = vmul.f32 1.0, %v873
  %v875 = vrcp.pop %v843
  %v876 = vmul.f32 %v843, %v875
  %v877 = vsub.f32 1.0, %v876
  %v878 = vmul.f32 %v875, %v877
  %v879 = vadd.f32 %v875, %v878
  %vm880 = vweird.f32 %v843
  %vm881 = vweird.f32 %v875
  %vm882 = vmor %vm880, %vm881
  %v883 = vsel %vm882, %v875, %v879
  %v884 = vand.u32 2147483647, %v843
  %vm885 = vcmp.eq.f32.partialorder %v884, 8.507059e+37
  %v886 = vand.u32 %v843, 2147483648
  %v887 = vor.u32 1.1754944e-38, %v886
  %v888 = vsel %vm885, %v887, %v883
  %v889 = vmul.f32 1.0, %v888
  %v890 = vrcp.pop %v844
  %v891 = vmul.f32 %v844, %v890
  %v892 = vsub.f32 1.0, %v891
  %v893 = vmul.f32 %v890, %v892
  %v894 = vadd.f32 %v890, %v893
  %vm895 = vweird.f32 %v844
  %vm896 = vweird.f32 %v890
  %vm897 = vmor %vm895, %vm896
  %v898 = vsel %vm897, %v890, %v894
  %v899 = vand.u32 2147483647, %v844
  %vm900 = vcmp.eq.f32.partialorder %v899, 8.507059e+37
  %v901 = vand.u32 %v844, 2147483648
  %v902 = vor.u32 1.1754944e-38, %v901
  %v903 = vsel %vm900, %v902, %v898
  %v904 = vmul.f32 1.0, %v903
  %v905 = vmul.f32 %v801, %v859
  %v906 = vmul.f32 %v824, %v874
  %v907 = vmul.f32 %v804, %v889
  %v908 = vmul.f32 %v827, %v904
  %909 = vrot.lane.b32.xlu0 %v905, 17
  %v910 = vpop.permute.xlu0 %909
  %911 = vrot.lane.b32.xlu0 %v907, 17
  %v912 = vpop.permute.xlu0 %911
  %913 = vrot.lane.b32.xlu0 %v906, 17
  %v914 = vpop.permute.xlu0 %913
  %915 = vrot.lane.b32.xlu0 %v908, 17
  %v916 = vpop.permute.xlu0 %915
  %v917 = vsel %vm206, %v910, %v914
  %v918 = vsel %vm206, %v912, %v916
  %v919 = vsel %vm206, %v914, %v910
  %v920 = vsel %vm206, %v916, %v912
  %v921 = vmul.f32 %v919, %v211
  %v922 = vmul.f32 %v917, %v212
  %v923 = vmul.f32 %v920, %v211
  %v924 = vmul.f32 %v918, %v212
  %v925 = vmul.f32 %v921, %v220
  %v926 = vmul.f32 %v922, %v220
  %v927 = vmul.f32 %v923, %v225
  %v928 = vmul.f32 %v924, %v225
  %v929 = vadd.f32 %v925, 0.0
  %v930 = vadd.f32 %v926, 0.0
  %v931 = vadd.f32 %v927, 0.0
  %v932 = vadd.f32 %v928, 0.0
  %933 = vrot.lane.b32.xlu0 %v905, 16
  %v934 = vpop.permute.xlu0 %933
  %935 = vrot.lane.b32.xlu0 %v907, 16
  %v936 = vpop.permute.xlu0 %935
  %937 = vrot.lane.b32.xlu0 %v906, 16
  %v938 = vpop.permute.xlu0 %937
  %939 = vrot.lane.b32.xlu0 %v908, 16
  %v940 = vpop.permute.xlu0 %939
  %v941 = vsel %vm243, %v934, %v938
  %v942 = vsel %vm243, %v936, %v940
  %v943 = vsel %vm243, %v938, %v934
  %v944 = vsel %vm243, %v940, %v936
  %v945 = vmul.f32 %v943, %v248
  %v946 = vmul.f32 %v941, %v249
  %v947 = vmul.f32 %v944, %v248
  %v948 = vmul.f32 %v942, %v249
  %v949 = vmul.f32 %v945, %v256
  %v950 = vmul.f32 %v946, %v256
  %v951 = vmul.f32 %v947, %v260
  %v952 = vmul.f32 %v948, %v260
  %v953 = vadd.f32 %v929, %v949
  %v954 = vadd.f32 %v930, %v950
  %v955 = vadd.f32 %v931, %v951
  %v956 = vadd.f32 %v932, %v952
  %957 = vrot.lane.b32.xlu0 %v905, 15
  %v958 = vpop.permute.xlu0 %957
  %959 = vrot.lane.b32.xlu0 %v907, 15
  %v960 = vpop.permute.xlu0 %959
  %961 = vrot.lane.b32.xlu0 %v906, 15
  %v962 = vpop.permute.xlu0 %961
  %963 = vrot.lane.b32.xlu0 %v908, 15
  %v964 = vpop.permute.xlu0 %963
  %v965 = vsel %vm278, %v958, %v962
  %v966 = vsel %vm278, %v960, %v964
  %v967 = vsel %vm278, %v962, %v958
  %v968 = vsel %vm278, %v964, %v960
  %v969 = vmul.f32 %v967, %v283
  %v970 = vmul.f32 %v965, %v284
  %v971 = vmul.f32 %v968, %v283
  %v972 = vmul.f32 %v966, %v284
  %v973 = vmul.f32 %v969, %v291
  %v974 = vmul.f32 %v970, %v291
  %v975 = vmul.f32 %v971, %v295
  %v976 = vmul.f32 %v972, %v295
  %v977 = vadd.f32 %v953, %v973
  %v978 = vadd.f32 %v954, %v974
  %v979 = vadd.f32 %v955, %v975
  %v980 = vadd.f32 %v956, %v976
  %981 = vrot.lane.b32.xlu0 %v905, 1
  %v982 = vpop.permute.xlu0 %981
  %983 = vrot.lane.b32.xlu0 %v907, 1
  %v984 = vpop.permute.xlu0 %983
  %985 = vrot.lane.b32.xlu0 %v906, 1
  %v986 = vpop.permute.xlu0 %985
  %987 = vrot.lane.b32.xlu0 %v908, 1
  %v988 = vpop.permute.xlu0 %987
  %v989 = vsel %vm313, %v982, %v986
  %v990 = vsel %vm313, %v984, %v988
  %v991 = vsel %vm313, %v986, %v982
  %v992 = vsel %vm313, %v988, %v984
  %v993 = vmul.f32 %v991, %v318
  %v994 = vmul.f32 %v989, %v319
  %v995 = vmul.f32 %v992, %v318
  %v996 = vmul.f32 %v990, %v319
  %v997 = vmul.f32 %v993, %v326
  %v998 = vmul.f32 %v994, %v326
  %v999 = vmul.f32 %v995, %v330
  %v1000 = vmul.f32 %v996, %v330
  %v1001 = vadd.f32 %v977, %v997
  %v1002 = vadd.f32 %v978, %v998
  %v1003 = vadd.f32 %v979, %v999
  %v1004 = vadd.f32 %v980, %v1000
  %v1005 = vmul.f32 %v905, %v342
  %v1006 = vmul.f32 %v906, %v342
  %v1007 = vmul.f32 %v907, %v346
  %v1008 = vmul.f32 %v908, %v346
  %v1009 = vadd.f32 %v1001, %v1005
  %v1010 = vadd.f32 %v1002, %v1006
  %v1011 = vadd.f32 %v1003, %v1007
  %v1012 = vadd.f32 %v1004, %v1008
  %1013 = vrot.lane.b32.xlu0 %v905, 127
  %v1014 = vpop.permute.xlu0 %1013
  %1015 = vrot.lane.b32.xlu0 %v907, 127
  %v1016 = vpop.permute.xlu0 %1015
  %1017 = vrot.lane.b32.xlu0 %v906, 127
  %v1018 = vpop.permute.xlu0 %1017
  %1019 = vrot.lane.b32.xlu0 %v908, 127
  %v1020 = vpop.permute.xlu0 %1019
  %v1021 = vsel %vm364, %v1014, %v1018
  %v1022 = vsel %vm364, %v1016, %v1020
  %v1023 = vsel %vm364, %v1018, %v1014
  %v1024 = vsel %vm364, %v1020, %v1016
  %v1025 = vmul.f32 %v1021, %v369
  %v1026 = vmul.f32 %v1023, %v370
  %v1027 = vmul.f32 %v1022, %v369
  %v1028 = vmul.f32 %v1024, %v370
  %v1029 = vmul.f32 %v1025, %v377
  %v1030 = vmul.f32 %v1026, %v377
  %v1031 = vmul.f32 %v1027, %v381
  %v1032 = vmul.f32 %v1028, %v381
  %v1033 = vadd.f32 %v1009, %v1029
  %v1034 = vadd.f32 %v1010, %v1030
  %v1035 = vadd.f32 %v1011, %v1031
  %v1036 = vadd.f32 %v1012, %v1032
  %1037 = vrot.lane.b32.xlu0 %v905, 113
  %v1038 = vpop.permute.xlu0 %1037
  %1039 = vrot.lane.b32.xlu0 %v907, 113
  %v1040 = vpop.permute.xlu0 %1039
  %1041 = vrot.lane.b32.xlu0 %v906, 113
  %v1042 = vpop.permute.xlu0 %1041
  %1043 = vrot.lane.b32.xlu0 %v908, 113
  %v1044 = vpop.permute.xlu0 %1043
  %v1045 = vsel %vm399, %v1038, %v1042
  %v1046 = vsel %vm399, %v1040, %v1044
  %v1047 = vsel %vm399, %v1042, %v1038
  %v1048 = vsel %vm399, %v1044, %v1040
  %v1049 = vmul.f32 %v1045, %v404
  %v1050 = vmul.f32 %v1047, %v405
  %v1051 = vmul.f32 %v1046, %v404
  %v1052 = vmul.f32 %v1048, %v405
  %v1053 = vmul.f32 %v1049, %v412
  %v1054 = vmul.f32 %v1050, %v412
  %v1055 = vmul.f32 %v1051, %v416
  %v1056 = vmul.f32 %v1052, %v416
  %v1057 = vadd.f32 %v1033, %v1053
  %v1058 = vadd.f32 %v1034, %v1054
  %v1059 = vadd.f32 %v1035, %v1055
  %v1060 = vadd.f32 %v1036, %v1056
  %1061 = vrot.lane.b32.xlu0 %v905, 112
  %v1062 = vpop.permute.xlu0 %1061
  %1063 = vrot.lane.b32.xlu0 %v907, 112
  %v1064 = vpop.permute.xlu0 %1063
  %1065 = vrot.lane.b32.xlu0 %v906, 112
  %v1066 = vpop.permute.xlu0 %1065
  %1067 = vrot.lane.b32.xlu0 %v908, 112
  %v1068 = vpop.permute.xlu0 %1067
  %v1069 = vsel %vm434, %v1062, %v1066
  %v1070 = vsel %vm434, %v1064, %v1068
  %v1071 = vsel %vm434, %v1066, %v1062
  %v1072 = vsel %vm434, %v1068, %v1064
  %v1073 = vmul.f32 %v1069, %v439
  %v1074 = vmul.f32 %v1071, %v440
  %v1075 = vmul.f32 %v1070, %v439
  %v1076 = vmul.f32 %v1072, %v440
  %v1077 = vmul.f32 %v1073, %v447
  %v1078 = vmul.f32 %v1074, %v447
  %v1079 = vmul.f32 %v1075, %v451
  %v1080 = vmul.f32 %v1076, %v451
  %v1081 = vadd.f32 %v1057, %v1077
  %v1082 = vadd.f32 %v1058, %v1078
  %v1083 = vadd.f32 %v1059, %v1079
  %v1084 = vadd.f32 %v1060, %v1080
  %1085 = vrot.lane.b32.xlu0 %v905, 111
  %v1086 = vpop.permute.xlu0 %1085
  %1087 = vrot.lane.b32.xlu0 %v907, 111
  %v1088 = vpop.permute.xlu0 %1087
  %1089 = vrot.lane.b32.xlu0 %v906, 111
  %v1090 = vpop.permute.xlu0 %1089
  %1091 = vrot.lane.b32.xlu0 %v908, 111
  %v1092 = vpop.permute.xlu0 %1091
  %v1093 = vsel %vm469, %v1086, %v1090
  %v1094 = vsel %vm469, %v1088, %v1092
  %v1095 = vsel %vm469, %v1090, %v1086
  %v1096 = vsel %vm469, %v1092, %v1088
  %v1097 = vmul.f32 %v1093, %v474
  %v1098 = vmul.f32 %v1095, %v475
  %v1099 = vmul.f32 %v1094, %v474
  %v1100 = vmul.f32 %v1096, %v475
  %v1101 = vmul.f32 %v1097, %v482
  %v1102 = vmul.f32 %v1098, %v482
  %v1103 = vmul.f32 %v1099, %v486
  %v1104 = vmul.f32 %v1100, %v486
  %v1105 = vadd.f32 %v1081, %v1101
  %v1106 = vadd.f32 %v1082, %v1102
  %v1107 = vadd.f32 %v1083, %v1103
  %v1108 = vadd.f32 %v1084, %v1104
  %v1109 = vadd.f32 %v1105, %v498
  %v1110 = vadd.f32 %v1106, %v498
  %v1111 = vadd.f32 %v1107, %v502
  %v1112 = vadd.f32 %v1108, %v502
  %v1113 = vxor.u32 %v1109, 2147483648
  %v1114 = vxor.u32 %v1110, 2147483648
  %v1115 = vxor.u32 %v1111, 2147483648
  %v1116 = vxor.u32 %v1112, 2147483648
  %v1117 = vmul.f32 %v1113, 1.442695
  %v1118 = vpow.pop %v1117
  %v1119 = vmul.f32 %v1114, 1.442695
  %v1120 = vpow.pop %v1119
  %v1121 = vmul.f32 %v1115, 1.442695
  %v1122 = vpow.pop %v1121
  %v1123 = vmul.f32 %v1116, 1.442695
  %v1124 = vpow.pop %v1123
  %v1125 = vadd.f32 %v1118, 1.0
  %v1126 = vadd.f32 %v1120, 1.0
  %v1127 = vadd.f32 %v1122, 1.0
  %v1128 = vadd.f32 %v1124, 1.0
  %v1129 = vrcp.pop %v1125
  %v1130 = vmul.f32 %v1125, %v1129
  %v1131 = vsub.f32 1.0, %v1130
  %v1132 = vmul.f32 %v1129, %v1131
  %v1133 = vadd.f32 %v1129, %v1132
  %vm1134 = vweird.f32 %v1125
  %vm1135 = vweird.f32 %v1129
  %vm1136 = vmor %vm1134, %vm1135
  %v1137 = vsel %vm1136, %v1129, %v1133
  %v1138 = vand.u32 2147483647, %v1125
  %vm1139 = vcmp.eq.f32.partialorder %v1138, 8.507059e+37
  %v1140 = vand.u32 %v1125, 2147483648
  %v1141 = vor.u32 1.1754944e-38, %v1140
  %v1142 = vsel %vm1139, %v1141, %v1137
  %v1143 = vmul.f32 1.0, %v1142
  %v1144 = vrcp.pop %v1126
  %v1145 = vmul.f32 %v1126, %v1144
  %v1146 = vsub.f32 1.0, %v1145
  %v1147 = vmul.f32 %v1144, %v1146
  %v1148 = vadd.f32 %v1144, %v1147
  %vm1149 = vweird.f32 %v1126
  %vm1150 = vweird.f32 %v1144
  %vm1151 = vmor %vm1149, %vm1150
  %v1152 = vsel %vm1151, %v1144, %v1148
  %v1153 = vand.u32 2147483647, %v1126
  %vm1154 = vcmp.eq.f32.partialorder %v1153, 8.507059e+37
  %v1155 = vand.u32 %v1126, 2147483648
  %v1156 = vor.u32 1.1754944e-38, %v1155
  %v1157 = vsel %vm1154, %v1156, %v1152
  %v1158 = vmul.f32 1.0, %v1157
  %v1159 = vrcp.pop %v1127
  %v1160 = vmul.f32 %v1127, %v1159
  %v1161 = vsub.f32 1.0, %v1160
  %v1162 = vmul.f32 %v1159, %v1161
  %v1163 = vadd.f32 %v1159, %v1162
  %vm1164 = vweird.f32 %v1127
  %vm1165 = vweird.f32 %v1159
  %vm1166 = vmor %vm1164, %vm1165
  %v1167 = vsel %vm1166, %v1159, %v1163
  %v1168 = vand.u32 2147483647, %v1127
  %vm1169 = vcmp.eq.f32.partialorder %v1168, 8.507059e+37
  %v1170 = vand.u32 %v1127, 2147483648
  %v1171 = vor.u32 1.1754944e-38, %v1170
  %v1172 = vsel %vm1169, %v1171, %v1167
  %v1173 = vmul.f32 1.0, %v1172
  %v1174 = vrcp.pop %v1128
  %v1175 = vmul.f32 %v1128, %v1174
  %v1176 = vsub.f32 1.0, %v1175
  %v1177 = vmul.f32 %v1174, %v1176
  %v1178 = vadd.f32 %v1174, %v1177
  %vm1179 = vweird.f32 %v1128
  %vm1180 = vweird.f32 %v1174
  %vm1181 = vmor %vm1179, %vm1180
  %v1182 = vsel %vm1181, %v1174, %v1178
  %v1183 = vand.u32 2147483647, %v1128
  %vm1184 = vcmp.eq.f32.partialorder %v1183, 8.507059e+37
  %v1185 = vand.u32 %v1128, 2147483648
  %v1186 = vor.u32 1.1754944e-38, %v1185
  %v1187 = vsel %vm1184, %v1186, %v1182
  %v1188 = vmul.f32 1.0, %v1187
  %v1189 = vmul.f32 %v1109, %v1143
  %v1190 = vmul.f32 %v1110, %v1158
  %v1191 = vmul.f32 %v1111, %v1173
  %v1192 = vmul.f32 %v1112, %v1188
  %v1193 = vadd.f32 %v1189, %v1190
  %1194 = vadd.xlane.f32.xlu0 %v1193
  %v1195 = vpop.xlane.xlu0 %1194
  %v1196 = vadd.f32 %v1191, %v1192
  %1197 = vadd.xlane.f32.xlu0 %v1196
  %v1198 = vpop.xlane.xlu0 %1197
  %v1199 = vmul.f32 %v1195, %v600
  %v1200 = vmul.f32 %v1198, %v600
  %v1201 = vmul.f32 %v32, %v1199
  %v1202 = vmul.f32 %v33, %v1200
  %v1203 = vsel %vm58, %v1201, 0.0
  %v1204 = vsel %vm58, %v1202, 0.0
  %v1205 = vadd.f32 %v1203, %v1204
  %v1206 = vrot.slane %v1205, 4
  %v1207 = vadd.f32 %v1205, %v1206
  %v1208 = vrot.slane %v1207, 2
  %v1209 = vadd.f32 %v1207, %v1208
  %v1210 = vrot.slane %v1209, 1
  %v1211 = vadd.f32 %v1209, %v1210
  %v1212 = vld [vmem:[%s5] sm:$0x1]
  %v1213 = vadd.f32 %v1211, %v1212
  %v1214 = vxor.u32 %v1213, 2147483648
  %v1215 = vmul.f32 %v1214, 1.442695
  %v1216 = vpow.pop %v1215
  %v1217 = vadd.f32 %v1216, 1.0
  %v1218 = vrcp.pop %v1217
  %v1219 = vmul.f32 %v1217, %v1218
  %v1220 = vsub.f32 1.0, %v1219
  %v1221 = vmul.f32 %v1218, %v1220
  %v1222 = vadd.f32 %v1218, %v1221
  %vm1223 = vweird.f32 %v1217
  %vm1224 = vweird.f32 %v1218
  %vm1225 = vmor %vm1223, %vm1224
  %v1226 = vsel %vm1225, %v1218, %v1222
  %v1227 = vand.u32 2147483647, %v1217
  %vm1228 = vcmp.eq.f32.partialorder %v1227, 8.507059e+37
  %v1229 = vand.u32 %v1217, 2147483648
  %v1230 = vor.u32 1.1754944e-38, %v1229
  %v1231 = vsel %vm1228, %v1230, %v1226
  %v1232 = vmul.f32 1.0, %v1231
  %v1233 = vmul.f32 %v1213, %v1232
  %v1234 = vperm.slane %v1233, 0
  %1236 = vrot.lane.b32.xlu0 %v1234, 4
  %v1237 = vpop.permute.xlu0 %1236
  %v1239 = vmul.f32 %v32, %v1237
  %v1240 = vmul.f32 %v33, %v1237
  %1243 = vrot.lane.b32.xlu0 %v1239, 124
  %v1244 = vpop.permute.xlu0 %1243
  %1245 = vrot.lane.b32.xlu0 %v1240, 124
  %v1246 = vpop.permute.xlu0 %1245
  %v1249 = vsel %vm58, %v1244, 0.0
  %1250 = vadd.xlane.f32.xlu0 %v1249
  %v1251 = vpop.xlane.xlu0 %1250
  %v1252 = vsel %vm58, %v1246, 0.0
  %1253 = vadd.xlane.f32.xlu0 %v1252
  %v1254 = vpop.xlane.xlu0 %1253
  %v1255 = vadd.f32 %v1251, %v29
  %v1256 = vadd.f32 %v1254, %v30
  %v1257 = vxor.u32 %v1255, 2147483648
  %v1258 = vxor.u32 %v1256, 2147483648
  %v1259 = vmul.f32 %v1257, 1.442695
  %v1260 = vpow.pop %v1259
  %v1261 = vmul.f32 %v1258, 1.442695
  %v1262 = vpow.pop %v1261
  %v1263 = vadd.f32 %v1260, 1.0
  %v1264 = vadd.f32 %v1262, 1.0
  %v1265 = vrcp.pop %v1263
  %v1266 = vmul.f32 %v1263, %v1265
  %v1267 = vsub.f32 1.0, %v1266
  %v1268 = vmul.f32 %v1265, %v1267
  %v1269 = vadd.f32 %v1265, %v1268
  %vm1270 = vweird.f32 %v1263
  %vm1271 = vweird.f32 %v1265
  %vm1272 = vmor %vm1270, %vm1271
  %v1273 = vsel %vm1272, %v1265, %v1269
  %v1274 = vand.u32 2147483647, %v1263
  %vm1275 = vcmp.eq.f32.partialorder %v1274, 8.507059e+37
  %v1276 = vand.u32 %v1263, 2147483648
  %v1277 = vor.u32 1.1754944e-38, %v1276
  %v1278 = vsel %vm1275, %v1277, %v1273
  %v1279 = vmul.f32 1.0, %v1278
  %v1280 = vrcp.pop %v1264
  %v1281 = vmul.f32 %v1264, %v1280
  %v1282 = vsub.f32 1.0, %v1281
  %v1283 = vmul.f32 %v1280, %v1282
  %v1284 = vadd.f32 %v1280, %v1283
  %vm1285 = vweird.f32 %v1264
  %vm1286 = vweird.f32 %v1280
  %vm1287 = vmor %vm1285, %vm1286
  %v1288 = vsel %vm1287, %v1280, %v1284
  %v1289 = vand.u32 2147483647, %v1264
  %vm1290 = vcmp.eq.f32.partialorder %v1289, 8.507059e+37
  %v1291 = vand.u32 %v1264, 2147483648
  %v1292 = vor.u32 1.1754944e-38, %v1291
  %v1293 = vsel %vm1290, %v1292, %v1288
  %v1294 = vmul.f32 1.0, %v1293
  %1296 = vset.pattern.permute.xlu0 2
  %1297 = vperm.xlu0 %1296, %v1279
  %v1298 = vpop.permute.xlu0 %1297
  %1301 = vset.pattern.permute.xlu0 2
  %1302 = vperm.xlu0 %1301, %v1294
  %v1303 = vpop.permute.xlu0 %1302
  %v1305 = vmul.f32 %v1189, %v1298
  %v1306 = vmul.f32 %v1190, %v1298
  %v1307 = vmul.f32 %v1191, %v1303
  %v1308 = vmul.f32 %v1192, %v1303
  %1309 = vmatpush.msra.mxu0 0.0
  %1310 = vmatpush.msra.mxu0 0.0
  %1311 = vmatpush.msra.mxu0 0.0
  %1312 = vmatpush.msra.mxu0 0.0
  %1313 = vmatpush.msra.mxu0 0.0
  %1314 = vmatpush.msra.mxu0 0.0
  %1315 = vmatpush.msra.mxu0 0.0
  %1316 = vmatpush.msra.mxu0 0.0
  %1317 = vmatpush.msra.mxu0 0.0
  %1318 = vmatpush.msra.mxu0 0.0
  %1319 = vmatpush.msra.mxu0 0.0
  %1320 = vmatpush.msra.mxu0 0.0
  %1321 = vmatpush.msra.mxu0 0.0
  %1322 = vmatpush.msra.mxu0 0.0
  %1323 = vmatpush.msra.mxu0 %v1307
  %1324 = vmatpush.msra.mxu0 %v1305
  %1325 = vmatmul.f32.gmra.mxu0 %v718
  %v1326 = vpop.f32.mrf.mxu0
  %v1327 = vadd.f32 %v714, %v1326
  %1328 = vdwg.mxu0
  %1329 = vmatpush.msra.mxu0 0.0
  %1330 = vmatpush.msra.mxu0 0.0
  %1331 = vmatpush.msra.mxu0 0.0
  %1332 = vmatpush.msra.mxu0 0.0
  %1333 = vmatpush.msra.mxu0 0.0
  %1334 = vmatpush.msra.mxu0 0.0
  %1335 = vmatpush.msra.mxu0 0.0
  %1336 = vmatpush.msra.mxu0 0.0
  %1337 = vmatpush.msra.mxu0 0.0
  %1338 = vmatpush.msra.mxu0 0.0
  %1339 = vmatpush.msra.mxu0 0.0
  %1340 = vmatpush.msra.mxu0 0.0
  %1341 = vmatpush.msra.mxu0 0.0
  %1342 = vmatpush.msra.mxu0 0.0
  %1343 = vmatpush.msra.mxu0 %v1308
  %1344 = vmatpush.msra.mxu0 %v1306
  %1345 = vmatmul.f32.gmra.mxu0 %v718
  %v1346 = vpop.f32.mrf.mxu0
  %v1347 = vadd.f32 %v714, %v1346
  %1348 = vdwg.mxu0
  %1349 = vst [vmem:[#allocation1] ss:$2 sm:$0xff] %v774
  %v1350 = vld.sshfl [vmem:[#allocation1] sm:$0xff pattern:$0x75316420]
  %v1351 = vld.sshfl [vmem:[#allocation1 + $0x8] sm:$0xff pattern:$0x75316420]
  %v1354 = vadd.f32 %v1327, %v1350
  %v1355 = vadd.f32 %v1347, %v1351
  %v1358 = vrot.slane %v1355, 4
  %v1359 = vsel %vm65, %v1354, %v1358
  %s1361 = scalar_lea.vmem %s8, 8
  %1362 = vst [vmem:[%s1361] sm:$0xff] %v1359
  // Predicated region
  $region34: #{mbconv_forward.1} parent=0 // pred_check
    _
  $region35: #{mbconv_forward.1} parent=0 // pred_check_branch
    %1364 = sbr.rel (0) target = $region37
  $region36: #{mbconv_forward.1} parent=0 // pred_region
    _
  $region37: #{mbconv_forward.1} parent=0 // pred_fallthru
    _
  // Predicated region
  $region38: #{mbconv_forward.1} parent=0 // pred_check
    _
  $region39: #{mbconv_forward.1} parent=0 // pred_check_branch
    %1366 = sbr.rel (0) target = $region41
  $region40: #{mbconv_forward.1} parent=0 // pred_region
    _
  $region41: #{mbconv_forward.1} parent=0 // pred_fallthru
    _

</llo_original>
